<compile_context>
chip_gen: v6e
topology: v6e:2x2x1
jax: 0.10.0
libtpu: 0.0.40
codegen_flags: <defaults>
</compile_context>

<pallas_src>
import functools

import jax
import jax.numpy as jnp
from jax.experimental import pallas as pl
from jax.experimental.pallas import tpu as pltpu

LANE = 128


def _round_up(n, m):
    return ((n + m - 1) // m) * m


# --------------------------------------------------------------------------
# Kernel: whole fused forward for one batch tile.
# --------------------------------------------------------------------------
def extended_model_kernel(x_ref, eps_ref, w1_ref, w2_ref, w3_ref, b_ref, out_ref):
    h1p = w1_ref.shape[1]
    h2p = w2_ref.shape[1]

    # occlusion_layer: occlude input pixels, then the origin FNN's first Linear.
    one = jnp.ones((), x_ref.dtype)
    x_occ = (x_ref[...] * (one - eps_ref[...])).astype(jnp.bfloat16)
    h = jnp.dot(x_occ, w1_ref[...], preferred_element_type=jnp.float32)
    h = h + b_ref[0:1, :h1p]

    # extended_model = origin_model.children()[1:] = ReLU, Linear, ReLU, Linear.
    h = jnp.maximum(h, 0.0)
    h = jnp.dot(h.astype(jnp.bfloat16), w2_ref[...],
                preferred_element_type=jnp.float32)
    h = h + b_ref[1:2, :h2p]

    h = jnp.maximum(h, 0.0)
    out = jnp.dot(h.astype(jnp.bfloat16), w3_ref[...],
                  preferred_element_type=jnp.float32)
    out = out + b_ref[2:3, :]
    out_ref[...] = out.astype(out_ref.dtype)


# --------------------------------------------------------------------------
# Per-generation batch-tile choice.
#   v5e / v6e : 1 TensorCore  -> one grid step (no per-step pipeline overhead,
#                                M=256 fully fills the v6e MXU).
#   v7x (etc) : 2 TensorCores -> tb=128 so there are >=2 "parallel" grid
#                                steps and both cores get work.
# --------------------------------------------------------------------------
def pick_batch_tile(batch):
    kind = jax.devices()[0].device_kind.lower()
    single_tc = ("v5e" in kind) or ("v5 lite" in kind) or ("v6" in kind)
    if single_tc:
        return min(batch, 256)
    if batch >= 256:
        return 128
    return min(batch, 256)


# --------------------------------------------------------------------------
# Wrapper: no input copies/padding of x or eps (feature dim stays 784);
# batch-tiled grid; slice the padded bf16 result.
# --------------------------------------------------------------------------
@functools.partial(jax.jit, static_argnames=("out_dim", "tb"))
def extended_model_forward(x, epsilons, padded_params, out_dim, *, tb):
    w1p, w2p, w3p, bias = padded_params
    B, D = x.shape
    H1p = w1p.shape[1]
    H2p = w2p.shape[1]
    OUTp = w3p.shape[1]

    # Only the batch dim may need rounding to the tile; feature dim D stays
    # unpadded (full-extent last-dim block).  Not hit for B=256.
    Bp = _round_up(B, tb)
    if Bp != B:
        x = jnp.pad(x, ((0, Bp - B), (0, 0)))
        epsilons = jnp.pad(epsilons, ((0, Bp - B), (0, 0)))

    grid = (Bp // tb,)
    flops = 2 * Bp * (D * H1p + H1p * H2p + H2p * OUTp)
    bytes_accessed = (2 * Bp * D * x.dtype.itemsize               # x, eps
                      + (D * H1p + H1p * H2p + H2p * OUTp) * 2    # bf16 weights
                      + bias.size * 4                             # biases (f32)
                      + Bp * OUTp * 2)                            # bf16 output

    out_padded = pl.pallas_call(
        extended_model_kernel,
        out_shape=jax.ShapeDtypeStruct((Bp, OUTp), jnp.bfloat16),
        grid_spec=pltpu.PrefetchScalarGridSpec(
            num_scalar_prefetch=0,
            grid=grid,
            in_specs=[
                pl.BlockSpec((tb, D), lambda i: (i, 0)),      # x tile (bf16)
                pl.BlockSpec((tb, D), lambda i: (i, 0)),      # eps tile (bf16)
                # Constant index_map -> weights/biases stay resident in VMEM
                # across all grid steps (fetched once).
                pl.BlockSpec((D, H1p), lambda i: (0, 0)),
                pl.BlockSpec((H1p, H2p), lambda i: (0, 0)),
                pl.BlockSpec((H2p, OUTp), lambda i: (0, 0)),
                pl.BlockSpec(bias.shape, lambda i: (0, 0)),
            ],
            out_specs=pl.BlockSpec((tb, OUTp), lambda i: (i, 0)),
        ),
        compiler_params=pltpu.CompilerParams(
            dimension_semantics=("parallel",),   # shard batch tiles across TCs (v7x)
        ),
        cost_estimate=pl.CostEstimate(flops=flops, transcendentals=0,
                                      bytes_accessed=bytes_accessed),
    )(x, epsilons, w1p, w2p, w3p, bias)

    return out_padded[:B, :out_dim]


# --------------------------------------------------------------------------
# Parameter construction.
# --------------------------------------------------------------------------
def init_params(key, D, H1, H2, OUT):
    """Deterministic init mimicking PyTorch nn.Linear default (U[-1/sqrt(fan_in), +])."""
    ks = jax.random.split(key, 6)

    def lin(kw, kb, fan_in, fan_out):
        bound = 1.0 / jnp.sqrt(fan_in)
        w = jax.random.uniform(kw, (fan_in, fan_out), jnp.float32, -bound, bound)
        b = jax.random.uniform(kb, (1, fan_out), jnp.float32, -bound, bound)
        return w, b

    w1, b1 = lin(ks[0], ks[1], D, H1)
    w2, b2 = lin(ks[2], ks[3], H1, H2)
    w3, b3 = lin(ks[4], ks[5], H2, OUT)
    return (w1, b1, w2, b2, w3, b3)


def make_padded_params(params):
    """Zero-pad hidden/output feature dims to multiples of 128 (lane-dense);
    the contraction dim of W1 stays at D=784.  Weights -> bf16 for the MXU."""
    (w1, b1, w2, b2, w3, b3) = params
    D, H1 = w1.shape
    H2 = w2.shape[1]
    OUT = w3.shape[1]
    H1p, H2p, OUTp = (_round_up(n, LANE) for n in (H1, H2, OUT))

    def pad2(w, r, c):
        return jnp.pad(w, ((0, r - w.shape[0]), (0, c - w.shape[1])))

    w1p = pad2(w1, D, H1p).astype(jnp.bfloat16)       # (784, 128)
    w2p = pad2(w2, H1p, H2p).astype(jnp.bfloat16)     # (128, 128)
    w3p = pad2(w3, H2p, OUTp).astype(jnp.bfloat16)    # (128, 128)

    wb = max(H1p, H2p, OUTp)

    def padb(b):
        return jnp.pad(b.reshape(-1), (0, wb - b.size))

    bias = jnp.stack([padb(b1), padb(b2), padb(b3)]).astype(jnp.float32)  # (3, 128)
    return (w1p, w2p, w3p, bias)


def reference_forward(x, eps, params):
    (w1, b1, w2, b2, w3, b3) = params
    h = (x * (1.0 - eps)) @ w1 + b1
    h = jnp.maximum(h, 0.0)
    h = h @ w2 + b2
    h = jnp.maximum(h, 0.0)
    return h @ w3 + b3


if __name__ == "__main__":
    # Real MNIST-style FNN: 784 -> 100 -> 50 -> 10, mini-batch of 256.
    B, D, H1, H2, OUT = 256, 784, 100, 50, 10

    key = jax.random.PRNGKey(0)
    kx, keps, kp = jax.random.split(key, 3)

    x32 = jax.random.uniform(kx, (B, D), jnp.float32)           # MNIST-like pixels in [0,1)
    eps32 = jax.random.uniform(keps, (B, D), jnp.float32)       # per-pixel occlusion strengths
    # Cast the dominant (DMA-critical) input streams to bf16 where they are
    # produced, so the kernel reads half the bytes.
    x = x32.astype(jnp.bfloat16)
    epsilons = eps32.astype(jnp.bfloat16)

    params = init_params(kp, D, H1, H2, OUT)
    padded_params = make_padded_params(params)

    tb = pick_batch_tile(B)
    out = extended_model_forward(x, epsilons, padded_params, OUT, tb=tb)
    out = jax.block_until_ready(out)

    # Reference on the same bf16-rounded inputs; remaining error is bf16 MXU
    # operands (fp32 accumulation) plus the bf16 output cast.
    ref = reference_forward(x.astype(jnp.float32), epsilons.astype(jnp.float32), params)
    assert out.shape == (B, OUT)
    assert jnp.allclose(out.astype(jnp.float32), ref, atol=2e-2, rtol=2e-2), (
        f"mismatch vs JAX reference "
        f"(max|err|={float(jnp.max(jnp.abs(out.astype(jnp.float32) - ref)))})")

    print("KERNEL_OK")
</pallas_src>

<mosaic_0001>
module attributes {stable_mosaic.version = 11 : i64} {
  func.func @extended_model_kernel(%arg0: i32, %arg1: memref<128x784xbf16, #tpu.memory_space<vmem>>, %arg2: memref<128x784xbf16, #tpu.memory_space<vmem>>, %arg3: memref<784x128xbf16, #tpu.memory_space<vmem>>, %arg4: memref<128x128xbf16, #tpu.memory_space<vmem>>, %arg5: memref<128x128xbf16, #tpu.memory_space<vmem>>, %arg6: memref<3x128xf32, #tpu.memory_space<vmem>>, %arg7: memref<128x128xbf16, #tpu.memory_space<vmem>>) attributes {dimension_semantics = [#tpu.dimension_semantics<parallel>], iteration_bounds = array<i64: 2>, scalar_prefetch = 0 : i64, scratch_operands = 0 : i64, tpu.core_type = #tpu.core_type<tc>, window_params = [{transform_indices = @transform_0, window_bounds = array<i64: 128, 784>}, {transform_indices = @transform_1, window_bounds = array<i64: 128, 784>}, {pipeline_mode = #tpu.pipeline_mode<synchronous>, transform_indices = @transform_2, window_bounds = array<i64: 784, 128>}, {pipeline_mode = #tpu.pipeline_mode<synchronous>, transform_indices = @transform_3, window_bounds = array<i64: 128, 128>}, {pipeline_mode = #tpu.pipeline_mode<synchronous>, transform_indices = @transform_4, window_bounds = array<i64: 128, 128>}, {pipeline_mode = #tpu.pipeline_mode<synchronous>, transform_indices = @transform_5, window_bounds = array<i64: 3, 128>}, {transform_indices = @transform_6, window_bounds = array<i64: 128, 128>}]} {
    %c0 = arith.constant 0 : index
    %c0_0 = arith.constant 0 : index
    %0 = vector.load %arg1[%c0, %c0_0] : memref<128x784xbf16, #tpu.memory_space<vmem>>, vector<128x784xbf16>
    %c0_1 = arith.constant 0 : index
    %c0_2 = arith.constant 0 : index
    %1 = vector.load %arg2[%c0_1, %c0_2] : memref<128x784xbf16, #tpu.memory_space<vmem>>, vector<128x784xbf16>
    %cst = arith.constant 1.000000e+00 : bf16
    %2 = vector.broadcast %cst : bf16 to vector<128x784xbf16>
    %3 = arith.subf %2, %1 : vector<128x784xbf16>
    %4 = arith.mulf %0, %3 : vector<128x784xbf16>
    %c0_3 = arith.constant 0 : index
    %c0_4 = arith.constant 0 : index
    %5 = vector.load %arg3[%c0_3, %c0_4] : memref<784x128xbf16, #tpu.memory_space<vmem>>, vector<784x128xbf16>
    %cst_5 = arith.constant dense<0.000000e+00> : vector<128x128xf32>
    %6 = tpu.matmul %4, %5, %cst_5 {dimension_numbers = #tpu.dot_dimension_numbers<[1], [0], [0], [1], [0, 0, 1, 1], [], []>} : vector<128x784xbf16>, vector<784x128xbf16>, vector<128x128xf32> -> vector<128x128xf32>
    %c0_6 = arith.constant 0 : index
    %c0_7 = arith.constant 0 : index
    %7 = vector.load %arg6[%c0_6, %c0_7] : memref<3x128xf32, #tpu.memory_space<vmem>>, vector<1x128xf32>
    %8 = vector.broadcast %7 : vector<1x128xf32> to vector<128x128xf32>
    %9 = arith.addf %6, %8 : vector<128x128xf32>
    %cst_8 = arith.constant 0.000000e+00 : f32
    %10 = vector.broadcast %cst_8 : f32 to vector<128x128xf32>
    %11 = arith.maximumf %9, %10 : vector<128x128xf32>
    %12 = arith.truncf %11 : vector<128x128xf32> to vector<128x128xbf16>
    %c0_9 = arith.constant 0 : index
    %c0_10 = arith.constant 0 : index
    %13 = vector.load %arg4[%c0_9, %c0_10] : memref<128x128xbf16, #tpu.memory_space<vmem>>, vector<128x128xbf16>
    %cst_11 = arith.constant dense<0.000000e+00> : vector<128x128xf32>
    %14 = tpu.matmul %12, %13, %cst_11 {dimension_numbers = #tpu.dot_dimension_numbers<[1], [0], [0], [1], [0, 0, 1, 1], [], []>} : vector<128x128xbf16>, vector<128x128xbf16>, vector<128x128xf32> -> vector<128x128xf32>
    %c1 = arith.constant 1 : index
    %c0_12 = arith.constant 0 : index
    %15 = vector.load %arg6[%c1, %c0_12] : memref<3x128xf32, #tpu.memory_space<vmem>>, vector<1x128xf32>
    %16 = vector.broadcast %15 : vector<1x128xf32> to vector<128x128xf32>
    %17 = arith.addf %14, %16 : vector<128x128xf32>
    %cst_13 = arith.constant 0.000000e+00 : f32
    %18 = vector.broadcast %cst_13 : f32 to vector<128x128xf32>
    %19 = arith.maximumf %17, %18 : vector<128x128xf32>
    %20 = arith.truncf %19 : vector<128x128xf32> to vector<128x128xbf16>
    %c0_14 = arith.constant 0 : index
    %c0_15 = arith.constant 0 : index
    %21 = vector.load %arg5[%c0_14, %c0_15] : memref<128x128xbf16, #tpu.memory_space<vmem>>, vector<128x128xbf16>
    %cst_16 = arith.constant dense<0.000000e+00> : vector<128x128xf32>
    %22 = tpu.matmul %20, %21, %cst_16 {dimension_numbers = #tpu.dot_dimension_numbers<[1], [0], [0], [1], [0, 0, 1, 1], [], []>} : vector<128x128xbf16>, vector<128x128xbf16>, vector<128x128xf32> -> vector<128x128xf32>
    %c2 = arith.constant 2 : index
    %c0_17 = arith.constant 0 : index
    %23 = vector.load %arg6[%c2, %c0_17] : memref<3x128xf32, #tpu.memory_space<vmem>>, vector<1x128xf32>
    %24 = vector.broadcast %23 : vector<1x128xf32> to vector<128x128xf32>
    %25 = arith.addf %22, %24 : vector<128x128xf32>
    %26 = arith.truncf %25 : vector<128x128xf32> to vector<128x128xbf16>
    %c0_18 = arith.constant 0 : index
    %c0_19 = arith.constant 0 : index
    %27 = vector.load %arg7[%c0_18, %c0_19] : memref<128x128xbf16, #tpu.memory_space<vmem>>, vector<128x128xbf16>
    tpu.vector_store %arg7[%c0_18, %c0_19], %26 {strides = array<i32>} : memref<128x128xbf16, #tpu.memory_space<vmem>>, vector<128x128xbf16>,
    return
  }
  func.func @transform_0(%arg0: i32) -> (i32, i32) {
    %c0_i32 = arith.constant 0 : i32
    %c0_i32_0 = arith.constant 0 : i32
    return %arg0, %c0_i32 : i32, i32
  }
  func.func @transform_1(%arg0: i32) -> (i32, i32) {
    %c0_i32 = arith.constant 0 : i32
    %c0_i32_0 = arith.constant 0 : i32
    return %arg0, %c0_i32 : i32, i32
  }
  func.func @transform_2(%arg0: i32) -> (i32, i32) {
    %c0_i32 = arith.constant 0 : i32
    %c0_i32_0 = arith.constant 0 : i32
    %c0_i32_1 = arith.constant 0 : i32
    return %c0_i32, %c0_i32_0 : i32, i32
  }
  func.func @transform_3(%arg0: i32) -> (i32, i32) {
    %c0_i32 = arith.constant 0 : i32
    %c0_i32_0 = arith.constant 0 : i32
    %c0_i32_1 = arith.constant 0 : i32
    return %c0_i32, %c0_i32_0 : i32, i32
  }
  func.func @transform_4(%arg0: i32) -> (i32, i32) {
    %c0_i32 = arith.constant 0 : i32
    %c0_i32_0 = arith.constant 0 : i32
    %c0_i32_1 = arith.constant 0 : i32
    return %c0_i32, %c0_i32_0 : i32, i32
  }
  func.func @transform_5(%arg0: i32) -> (i32, i32) {
    %c0_i32 = arith.constant 0 : i32
    %c0_i32_0 = arith.constant 0 : i32
    %c0_i32_1 = arith.constant 0 : i32
    return %c0_i32, %c0_i32_0 : i32, i32
  }
  func.func @transform_6(%arg0: i32) -> (i32, i32) {
    %c0_i32 = arith.constant 0 : i32
    %c0_i32_0 = arith.constant 0 : i32
    return %arg0, %c0_i32 : i32, i32
  }
}

</mosaic_0001>

<llo_original>
// kernel: extended_model_forward.1
$region0: #{extended_model_forward.1}
  #allocation0 [shape = 'u32[]', space=smem, size = 0x4, offset = 0x4, fixed_abs, tag = 'smem constant byte address 0x4 - core index']
  #allocation1 [shape = 'u32[144,128]{1,0:T(1,128)}', space=vmem, size = 0x12000, scoped, tag = 'internal scratch']
  %s0 = inlined_call_operand.vmem [shape: bf16[256,784], index: 0, kind: input, shape index: {}]
  %s1 = inlined_call_operand.vmem [shape: bf16[256,784], index: 1, kind: input, shape index: {}]
  %s2 = inlined_call_operand.vmem [shape: bf16[784,128], index: 2, kind: input, shape index: {}]
  %s3 = inlined_call_operand.vmem [shape: bf16[128,128], index: 3, kind: input, shape index: {}]
  %s4 = inlined_call_operand.vmem [shape: bf16[128,128], index: 4, kind: input, shape index: {}]
  %s5 = inlined_call_operand.vmem [shape: f32[3,128], index: 5, kind: input, shape index: {}]
  %s6 = inlined_call_operand.vmem [shape: bf16[256,128], index: 6, kind: output, shape index: {}]
  %s7 = sld [smem:[#allocation0]]
  $region57: #{extended_model_forward.1} parent=0
    _
  %s9 = ssub.s32 1, %s7
  %s10 = scalar_select 0, %s9, %s7
  loop: start=0, step=1, limit=4
  $region2: #{extended_model_forward.1} parent=0 // loop_pre_header
    _
  $region3: #{extended_model_forward.1} parent=0 // loop_header
    %s12 = sphi 0, %s16
    %p13 = scmp.ge.s32.totalorder %s12, 4
    %s22 = sphi 0, %s24
    %s25 = sphi 0, %s22
    %s26 = sphi 0, %s25
    %s42 = sphi 0, %s26
    %s48 = sphi 0, %s50
    %s51 = sphi 0, %s48
    %s52 = sphi 0, %s51
    %s68 = sphi 0, %s52
    %s72 = sphi 0, %s72
    %s74 = sphi 0, %s72
    %s75 = sphi 0, %s74
    %s89 = sphi 0, %s75
    %s93 = sphi 0, %s93
    %s95 = sphi 0, %s93
    %s96 = sphi 0, %s95
    %s110 = sphi 0, %s96
    %s114 = sphi 0, %s114
    %s116 = sphi 0, %s114
    %s117 = sphi 0, %s116
    %s131 = sphi 0, %s117
    %s135 = sphi 0, %s135
    %s137 = sphi 0, %s135
    %s138 = sphi 0, %s137
    %s152 = sphi 0, %s138
    %s158 = sphi 0, %s160
    %s161 = sphi 0, %s158
    %s162 = sphi 0, %s161
    %s178 = sphi 0, %s162
  $region4: #{extended_model_forward.1} parent=0 // loop_header_branch
    %15 = sbr.rel (%p13) target = $region8
  $region5: #{extended_model_forward.1} parent=0 // loop_body
    %s17 = ssub.s32 %s12, 1
    %s18 = ssub.s32 %s12, 2
    %s19 = sadd.s32 %s12, 1
    %s20 = ssub.s32 %s12, %s19
    %p21 = scmp.eq.s32.totalorder %s20, 0
    %s23 = sadd.s32 %s22, 1
    %s24 = scalar_select %p21, %s22, %s23
    %p27 = pneg %p21
    %p28 = scmp.eq.s32.totalorder %s12, 1
    %p29 = por %p27, %p28
    %p30 = scmp.ne.s32.totalorder %s22, %s25
    %p31 = scmp.eq.s32.totalorder %s12, 0
    %p32 = por %p30, %p31
    %p33 = scmp.ne.s32.totalorder %s22, %s25
    %p34 = scmp.eq.s32.totalorder %s17, 1
    %p35 = por %p33, %p34
    %p36 = scmp.ne.s32.totalorder %s25, %s26
    %p37 = scmp.eq.s32.totalorder %s17, 0
    %p38 = por %p36, %p37
    %p39 = scmp.ne.s32.totalorder %s25, %s26
    %p40 = scmp.eq.s32.totalorder %s18, 1
    %p41 = por %p39, %p40
    %p43 = scmp.ne.s32.totalorder %s26, %s42
    %p44 = scmp.eq.s32.totalorder %s18, 0
    %p45 = por %p43, %p44
    %s46 = ssub.s32 %s12, %s19
    %p47 = scmp.eq.s32.totalorder %s46, 0
    %s49 = sadd.s32 %s48, 1
    %s50 = scalar_select %p47, %s48, %s49
    %p53 = pneg %p47
    %p54 = scmp.eq.s32.totalorder %s12, 1
    %p55 = por %p53, %p54
    %p56 = scmp.ne.s32.totalorder %s48, %s51
    %p57 = scmp.eq.s32.totalorder %s12, 0
    %p58 = por %p56, %p57
    %p59 = scmp.ne.s32.totalorder %s48, %s51
    %p60 = scmp.eq.s32.totalorder %s17, 1
    %p61 = por %p59, %p60
    %p62 = scmp.ne.s32.totalorder %s51, %s52
    %p63 = scmp.eq.s32.totalorder %s17, 0
    %p64 = por %p62, %p63
    %p65 = scmp.ne.s32.totalorder %s51, %s52
    %p66 = scmp.eq.s32.totalorder %s18, 1
    %p67 = por %p65, %p66
    %p69 = scmp.ne.s32.totalorder %s52, %s68
    %p70 = scmp.eq.s32.totalorder %s18, 0
    %p71 = por %p69, %p70
    %s73 = sadd.s32 %s72, 1
    %p76 = scmp.eq.s32.totalorder %s12, 1
    %p77 = scmp.ne.s32.totalorder %s72, %s74
    %p78 = scmp.eq.s32.totalorder %s12, 0
    %p79 = por %p77, %p78
    %p80 = scmp.ne.s32.totalorder %s72, %s74
    %p81 = scmp.eq.s32.totalorder %s17, 1
    %p82 = por %p80, %p81
    %p83 = scmp.ne.s32.totalorder %s74, %s75
    %p84 = scmp.eq.s32.totalorder %s17, 0
    %p85 = por %p83, %p84
    %p86 = scmp.ne.s32.totalorder %s74, %s75
    %p87 = scmp.eq.s32.totalorder %s18, 1
    %p88 = por %p86, %p87
    %p90 = scmp.ne.s32.totalorder %s75, %s89
    %p91 = scmp.eq.s32.totalorder %s18, 0
    %p92 = por %p90, %p91
    %s94 = sadd.s32 %s93, 1
    %p97 = scmp.eq.s32.totalorder %s12, 1
    %p98 = scmp.ne.s32.totalorder %s93, %s95
    %p99 = scmp.eq.s32.totalorder %s12, 0
    %p100 = por %p98, %p99
    %p101 = scmp.ne.s32.totalorder %s93, %s95
    %p102 = scmp.eq.s32.totalorder %s17, 1
    %p103 = por %p101, %p102
    %p104 = scmp.ne.s32.totalorder %s95, %s96
    %p105 = scmp.eq.s32.totalorder %s17, 0
    %p106 = por %p104, %p105
    %p107 = scmp.ne.s32.totalorder %s95, %s96
    %p108 = scmp.eq.s32.totalorder %s18, 1
    %p109 = por %p107, %p108
    %p111 = scmp.ne.s32.totalorder %s96, %s110
    %p112 = scmp.eq.s32.totalorder %s18, 0
    %p113 = por %p111, %p112
    %s115 = sadd.s32 %s114, 1
    %p118 = scmp.eq.s32.totalorder %s12, 1
    %p119 = scmp.ne.s32.totalorder %s114, %s116
    %p120 = scmp.eq.s32.totalorder %s12, 0
    %p121 = por %p119, %p120
    %p122 = scmp.ne.s32.totalorder %s114, %s116
    %p123 = scmp.eq.s32.totalorder %s17, 1
    %p124 = por %p122, %p123
    %p125 = scmp.ne.s32.totalorder %s116, %s117
    %p126 = scmp.eq.s32.totalorder %s17, 0
    %p127 = por %p125, %p126
    %p128 = scmp.ne.s32.totalorder %s116, %s117
    %p129 = scmp.eq.s32.totalorder %s18, 1
    %p130 = por %p128, %p129
    %p132 = scmp.ne.s32.totalorder %s117, %s131
    %p133 = scmp.eq.s32.totalorder %s18, 0
    %p134 = por %p132, %p133
    %s136 = sadd.s32 %s135, 1
    %p139 = scmp.eq.s32.totalorder %s12, 1
    %p140 = scmp.ne.s32.totalorder %s135, %s137
    %p141 = scmp.eq.s32.totalorder %s12, 0
    %p142 = por %p140, %p141
    %p143 = scmp.ne.s32.totalorder %s135, %s137
    %p144 = scmp.eq.s32.totalorder %s17, 1
    %p145 = por %p143, %p144
    %p146 = scmp.ne.s32.totalorder %s137, %s138
    %p147 = scmp.eq.s32.totalorder %s17, 0
    %p148 = por %p146, %p147
    %p149 = scmp.ne.s32.totalorder %s137, %s138
    %p150 = scmp.eq.s32.totalorder %s18, 1
    %p151 = por %p149, %p150
    %p153 = scmp.ne.s32.totalorder %s138, %s152
    %p154 = scmp.eq.s32.totalorder %s18, 0
    %p155 = por %p153, %p154
    %s156 = ssub.s32 %s12, %s19
    %p157 = scmp.eq.s32.totalorder %s156, 0
    %s159 = sadd.s32 %s158, 1
    %s160 = scalar_select %p157, %s158, %s159
    %p163 = pneg %p157
    %p164 = scmp.eq.s32.totalorder %s12, 1
    %p165 = por %p163, %p164
    %p166 = scmp.ne.s32.totalorder %s158, %s161
    %p167 = scmp.eq.s32.totalorder %s12, 0
    %p168 = por %p166, %p167
    %p169 = scmp.ne.s32.totalorder %s158, %s161
    %p170 = scmp.eq.s32.totalorder %s17, 1
    %p171 = por %p169, %p170
    %p172 = scmp.ne.s32.totalorder %s161, %s162
    %p173 = scmp.eq.s32.totalorder %s17, 0
    %p174 = por %p172, %p173
    %p175 = scmp.ne.s32.totalorder %s161, %s162
    %p176 = scmp.eq.s32.totalorder %s18, 1
    %p177 = por %p175, %p176
    %p179 = scmp.ne.s32.totalorder %s162, %s178
    %p180 = scmp.eq.s32.totalorder %s18, 0
    %p181 = por %p179, %p180
    %p182 = scmp.le.s32.totalorder 1, %s12
    %p183 = scmp.lt.s32.totalorder %s12, 3
    %p184 = pnand %p182, %p183
    %p185 = pneg %p184
    // Predicated region
    $region9: #{extended_model_forward.1} parent=5 // pred_check
      _
    $region10: #{extended_model_forward.1} parent=5 // pred_check_branch
      %187 = sbr.rel (%p184) target = $region12
    $region11: #{extended_model_forward.1} parent=5 // pred_region
      %s188 = ssub.s32 %s12, 1
      // Predicated region
      $region13: #{extended_model_forward.1} parent=11 // pred_check
        %p189 = pneg %p85
      $region14: #{extended_model_forward.1} parent=11 // pred_check_branch
        %191 = sbr.rel (%p189) target = $region16
      $region15: #{extended_model_forward.1} parent=11 // pred_region
        _
      $region16: #{extended_model_forward.1} parent=11 // pred_fallthru
        _
      // Predicated region
      $region17: #{extended_model_forward.1} parent=11 // pred_check
        %p192 = pneg %p106
      $region18: #{extended_model_forward.1} parent=11 // pred_check_branch
        %194 = sbr.rel (%p192) target = $region20
      $region19: #{extended_model_forward.1} parent=11 // pred_region
        _
      $region20: #{extended_model_forward.1} parent=11 // pred_fallthru
        _
      // Predicated region
      $region21: #{extended_model_forward.1} parent=11 // pred_check
        %p195 = pneg %p127
      $region22: #{extended_model_forward.1} parent=11 // pred_check_branch
        %197 = sbr.rel (%p195) target = $region24
      $region23: #{extended_model_forward.1} parent=11 // pred_region
        _
      $region24: #{extended_model_forward.1} parent=11 // pred_fallthru
        _
      // Predicated region
      $region25: #{extended_model_forward.1} parent=11 // pred_check
        %p198 = pneg %p148
      $region26: #{extended_model_forward.1} parent=11 // pred_check_branch
        %200 = sbr.rel (%p198) target = $region28
      $region27: #{extended_model_forward.1} parent=11 // pred_region
        _
      $region28: #{extended_model_forward.1} parent=11 // pred_fallthru
        _
    $region12: #{extended_model_forward.1} parent=5 // pred_fallthru
      _
    %p201 = scmp.lt.s32.totalorder %s12, 2
    // Predicated region
    $region29: #{extended_model_forward.1} parent=5 // pred_check
      %p202 = pneg %p201
    $region30: #{extended_model_forward.1} parent=5 // pred_check_branch
      %204 = sbr.rel (%p202) target = $region32
    $region31: #{extended_model_forward.1} parent=5 // pred_region
      // Predicated region
      $region33: #{extended_model_forward.1} parent=31 // pred_check
        %p205 = pneg %p32
      $region34: #{extended_model_forward.1} parent=31 // pred_check_branch
        %207 = sbr.rel (%p205) target = $region36
      $region35: #{extended_model_forward.1} parent=31 // pred_region
        %s208 = smul.u32 16, %s12
        %p209 = scmp.lt.s32.totalorder %s208, 31
        %s210 = scalar_select %p209, %s208, 31
        %s211 = smul.addr %s210, 7
        %s212 = smul.addr %s211, 4
        %s213 = scalar_lea.vmem %s0, %s212
        %s214 = smul.u32 16, %s12
      $region36: #{extended_model_forward.1} parent=31 // pred_fallthru
        _
      // Predicated region
      $region37: #{extended_model_forward.1} parent=31 // pred_check
        %p215 = pneg %p58
      $region38: #{extended_model_forward.1} parent=31 // pred_check_branch
        %217 = sbr.rel (%p215) target = $region40
      $region39: #{extended_model_forward.1} parent=31 // pred_region
        %s218 = smul.u32 16, %s12
        %p219 = scmp.lt.s32.totalorder %s218, 31
        %s220 = scalar_select %p219, %s218, 31
        %s221 = smul.addr %s220, 7
        %s222 = smul.addr %s221, 4
        %s223 = scalar_lea.vmem %s1, %s222
        %s224 = smul.u32 16, %s12
      $region40: #{extended_model_forward.1} parent=31 // pred_fallthru
        _
    $region32: #{extended_model_forward.1} parent=5 // pred_fallthru
      _
    %p225 = scmp.le.s32.totalorder 1, %s12
    %p226 = scmp.lt.s32.totalorder %s12, 3
    %p227 = pnand %p225, %p226
    %p228 = pneg %p227
    // Predicated region
    $region41: #{extended_model_forward.1} parent=5 // pred_check
      _
    $region42: #{extended_model_forward.1} parent=5 // pred_check_branch
      %230 = sbr.rel (%p227) target = $region44
    $region43: #{extended_model_forward.1} parent=5 // pred_region
      %s231 = ssub.s32 %s12, 1
      %s232 = smul.u32 16, %s17
      %p233 = scmp.lt.s32.totalorder %s232, 31
      %s234 = scalar_select %p233, %s232, 31
      %s235 = smul.addr %s234, 7
      %s236 = smul.addr %s235, 4
      %s237 = scalar_lea.vmem %s0, %s236
      %p238 = pneg %p38
      %p239 = pneg %p35
      %s240 = smul.u32 16, %s17
      %p241 = scmp.lt.s32.totalorder %s240, 31
      %s242 = scalar_select %p241, %s240, 31
      %s243 = smul.addr %s242, 7
      %s244 = smul.addr %s243, 4
      %s245 = scalar_lea.vmem %s1, %s244
      %p246 = pneg %p64
      %p247 = pneg %p61
      %p248 = pneg %p85
      %p249 = pneg %p82
      %p250 = pneg %p106
      %p251 = pneg %p103
      %p252 = pneg %p127
      %p253 = pneg %p124
      %p254 = pneg %p148
      %p255 = pneg %p145
      %p256 = pneg %p174
      %p257 = pneg %p171
      %s258 = smul.u32 16, %s17
      %p259 = scmp.lt.s32.totalorder %s258, 31
      %s260 = scalar_select %p259, %s258, 31
      %s261 = smul.addr %s260, 4
      %s262 = scalar_lea.vmem %s6, %s261
      %s263 = smul.u32 16, %s17
      %p264 = scmp.lt.s32.totalorder %s263, 31
      %s265 = scalar_select %p264, %s263, 31
      %s266 = smul.addr %s265, 7
      %s267 = smul.addr %s266, 4
      %s268 = scalar_lea.vmem %s0, %s267
      %s269 = smul.u32 16, %s17
      %s270 = smul.u32 16, %s17
      %p271 = scmp.lt.s32.totalorder %s270, 31
      %s272 = scalar_select %p271, %s270, 31
      %s273 = smul.addr %s272, 7
      %s274 = smul.addr %s273, 4
      %s275 = scalar_lea.vmem %s1, %s274
      %s276 = smul.u32 16, %s17
      %s277 = smul.u32 16, %s17
      %p278 = scmp.lt.s32.totalorder %s277, 31
      %s279 = scalar_select %p278, %s277, 31
      %s280 = smul.addr %s279, 4
      %s281 = scalar_lea.vmem %s6, %s280
      %s282 = smul.u32 16, %s17
      %v285 = vld [vmem:[%s268] sm:$0xff]
      %v286 = vld [vmem:[%s268 + $0x8] sm:$0xff]
      %v287 = vld [vmem:[%s268 + $0x10] sm:$0xff]
      %v288 = vld [vmem:[%s268 + $0x18] sm:$0xf]
      %v289 = vld [vmem:[%s268 + $0x1c] sm:$0xff]
      %v290 = vld [vmem:[%s268 + $0x24] sm:$0xff]
      %v291 = vld [vmem:[%s268 + $0x2c] sm:$0xff]
      %v292 = vld [vmem:[%s268 + $0x34] sm:$0xf]
      %v293 = vld [vmem:[%s268 + $0x38] sm:$0xff]
      %v294 = vld [vmem:[%s268 + $0x40] sm:$0xff]
      %v295 = vld [vmem:[%s268 + $0x48] sm:$0xff]
      %v296 = vld [vmem:[%s268 + $0x50] sm:$0xf]
      %v297 = vld [vmem:[%s268 + $0x54] sm:$0xff]
      %v298 = vld [vmem:[%s268 + $0x5c] sm:$0xff]
      %v299 = vld [vmem:[%s268 + $0x64] sm:$0xff]
      %v300 = vld [vmem:[%s268 + $0x6c] sm:$0xf]
      %v301 = vld [vmem:[%s268 + $0x70] sm:$0xff]
      %v302 = vld [vmem:[%s268 + $0x78] sm:$0xff]
      %v303 = vld [vmem:[%s268 + $0x80] sm:$0xff]
      %v304 = vld [vmem:[%s268 + $0x88] sm:$0xf]
      %v305 = vld [vmem:[%s268 + $0x8c] sm:$0xff]
      %v306 = vld [vmem:[%s268 + $0x94] sm:$0xff]
      %v307 = vld [vmem:[%s268 + $0x9c] sm:$0xff]
      %v308 = vld [vmem:[%s268 + $0xa4] sm:$0xf]
      %v309 = vld [vmem:[%s268 + $0xa8] sm:$0xff]
      %v310 = vld [vmem:[%s268 + $0xb0] sm:$0xff]
      %v311 = vld [vmem:[%s268 + $0xb8] sm:$0xff]
      %v312 = vld [vmem:[%s268 + $0xc0] sm:$0xf]
      %v313 = vld [vmem:[%s268 + $0xc4] sm:$0xff]
      %v314 = vld [vmem:[%s268 + $0xcc] sm:$0xff]
      %v315 = vld [vmem:[%s268 + $0xd4] sm:$0xff]
      %v316 = vld [vmem:[%s268 + $0xdc] sm:$0xf]
      %v317 = vld [vmem:[%s268 + $0xe0] sm:$0xff]
      %v318 = vld [vmem:[%s268 + $0xe8] sm:$0xff]
      %v319 = vld [vmem:[%s268 + $0xf0] sm:$0xff]
      %v320 = vld [vmem:[%s268 + $0xf8] sm:$0xf]
      %v321 = vld [vmem:[%s268 + $0xfc] sm:$0xff]
      %v322 = vld [vmem:[%s268 + $0x104] sm:$0xff]
      %v323 = vld [vmem:[%s268 + $0x10c] sm:$0xff]
      %v324 = vld [vmem:[%s268 + $0x114] sm:$0xf]
      %v325 = vld [vmem:[%s268 + $0x118] sm:$0xff]
      %v326 = vld [vmem:[%s268 + $0x120] sm:$0xff]
      %v327 = vld [vmem:[%s268 + $0x128] sm:$0xff]
      %v328 = vld [vmem:[%s268 + $0x130] sm:$0xf]
      %v329 = vld [vmem:[%s268 + $0x134] sm:$0xff]
      %v330 = vld [vmem:[%s268 + $0x13c] sm:$0xff]
      %v331 = vld [vmem:[%s268 + $0x144] sm:$0xff]
      %v332 = vld [vmem:[%s268 + $0x14c] sm:$0xf]
      %v333 = vld [vmem:[%s268 + $0x150] sm:$0xff]
      %v334 = vld [vmem:[%s268 + $0x158] sm:$0xff]
      %v335 = vld [vmem:[%s268 + $0x160] sm:$0xff]
      %v336 = vld [vmem:[%s268 + $0x168] sm:$0xf]
      %v337 = vld [vmem:[%s268 + $0x16c] sm:$0xff]
      %v338 = vld [vmem:[%s268 + $0x174] sm:$0xff]
      %v339 = vld [vmem:[%s268 + $0x17c] sm:$0xff]
      %v340 = vld [vmem:[%s268 + $0x184] sm:$0xf]
      %v341 = vld [vmem:[%s268 + $0x188] sm:$0xff]
      %v342 = vld [vmem:[%s268 + $0x190] sm:$0xff]
      %v343 = vld [vmem:[%s268 + $0x198] sm:$0xff]
      %v344 = vld [vmem:[%s268 + $0x1a0] sm:$0xf]
      %v345 = vld [vmem:[%s268 + $0x1a4] sm:$0xff]
      %v346 = vld [vmem:[%s268 + $0x1ac] sm:$0xff]
      %v347 = vld [vmem:[%s268 + $0x1b4] sm:$0xff]
      %v348 = vld [vmem:[%s268 + $0x1bc] sm:$0xf]
      %v349 = vld [vmem:[%s275] sm:$0xff]
      %v350 = vld [vmem:[%s275 + $0x8] sm:$0xff]
      %v351 = vld [vmem:[%s275 + $0x10] sm:$0xff]
      %v352 = vld [vmem:[%s275 + $0x18] sm:$0xf]
      %v353 = vld [vmem:[%s275 + $0x1c] sm:$0xff]
      %v354 = vld [vmem:[%s275 + $0x24] sm:$0xff]
      %v355 = vld [vmem:[%s275 + $0x2c] sm:$0xff]
      %v356 = vld [vmem:[%s275 + $0x34] sm:$0xf]
      %v357 = vld [vmem:[%s275 + $0x38] sm:$0xff]
      %v358 = vld [vmem:[%s275 + $0x40] sm:$0xff]
      %v359 = vld [vmem:[%s275 + $0x48] sm:$0xff]
      %v360 = vld [vmem:[%s275 + $0x50] sm:$0xf]
      %v361 = vld [vmem:[%s275 + $0x54] sm:$0xff]
      %v362 = vld [vmem:[%s275 + $0x5c] sm:$0xff]
      %v363 = vld [vmem:[%s275 + $0x64] sm:$0xff]
      %v364 = vld [vmem:[%s275 + $0x6c] sm:$0xf]
      %v365 = vld [vmem:[%s275 + $0x70] sm:$0xff]
      %v366 = vld [vmem:[%s275 + $0x78] sm:$0xff]
      %v367 = vld [vmem:[%s275 + $0x80] sm:$0xff]
      %v368 = vld [vmem:[%s275 + $0x88] sm:$0xf]
      %v369 = vld [vmem:[%s275 + $0x8c] sm:$0xff]
      %v370 = vld [vmem:[%s275 + $0x94] sm:$0xff]
      %v371 = vld [vmem:[%s275 + $0x9c] sm:$0xff]
      %v372 = vld [vmem:[%s275 + $0xa4] sm:$0xf]
      %v373 = vld [vmem:[%s275 + $0xa8] sm:$0xff]
      %v374 = vld [vmem:[%s275 + $0xb0] sm:$0xff]
      %v375 = vld [vmem:[%s275 + $0xb8] sm:$0xff]
      %v376 = vld [vmem:[%s275 + $0xc0] sm:$0xf]
      %v377 = vld [vmem:[%s275 + $0xc4] sm:$0xff]
      %v378 = vld [vmem:[%s275 + $0xcc] sm:$0xff]
      %v379 = vld [vmem:[%s275 + $0xd4] sm:$0xff]
      %v380 = vld [vmem:[%s275 + $0xdc] sm:$0xf]
      %v381 = vld [vmem:[%s275 + $0xe0] sm:$0xff]
      %v382 = vld [vmem:[%s275 + $0xe8] sm:$0xff]
      %v383 = vld [vmem:[%s275 + $0xf0] sm:$0xff]
      %v384 = vld [vmem:[%s275 + $0xf8] sm:$0xf]
      %v385 = vld [vmem:[%s275 + $0xfc] sm:$0xff]
      %v386 = vld [vmem:[%s275 + $0x104] sm:$0xff]
      %v387 = vld [vmem:[%s275 + $0x10c] sm:$0xff]
      %v388 = vld [vmem:[%s275 + $0x114] sm:$0xf]
      %v389 = vld [vmem:[%s275 + $0x118] sm:$0xff]
      %v390 = vld [vmem:[%s275 + $0x120] sm:$0xff]
      %v391 = vld [vmem:[%s275 + $0x128] sm:$0xff]
      %v392 = vld [vmem:[%s275 + $0x130] sm:$0xf]
      %v393 = vld [vmem:[%s275 + $0x134] sm:$0xff]
      %v394 = vld [vmem:[%s275 + $0x13c] sm:$0xff]
      %v395 = vld [vmem:[%s275 + $0x144] sm:$0xff]
      %v396 = vld [vmem:[%s275 + $0x14c] sm:$0xf]
      %v397 = vld [vmem:[%s275 + $0x150] sm:$0xff]
      %v398 = vld [vmem:[%s275 + $0x158] sm:$0xff]
      %v399 = vld [vmem:[%s275 + $0x160] sm:$0xff]
      %v400 = vld [vmem:[%s275 + $0x168] sm:$0xf]
      %v401 = vld [vmem:[%s275 + $0x16c] sm:$0xff]
      %v402 = vld [vmem:[%s275 + $0x174] sm:$0xff]
      %v403 = vld [vmem:[%s275 + $0x17c] sm:$0xff]
      %v404 = vld [vmem:[%s275 + $0x184] sm:$0xf]
      %v405 = vld [vmem:[%s275 + $0x188] sm:$0xff]
      %v406 = vld [vmem:[%s275 + $0x190] sm:$0xff]
      %v407 = vld [vmem:[%s275 + $0x198] sm:$0xff]
      %v408 = vld [vmem:[%s275 + $0x1a0] sm:$0xf]
      %v409 = vld [vmem:[%s275 + $0x1a4] sm:$0xff]
      %v410 = vld [vmem:[%s275 + $0x1ac] sm:$0xff]
      %v411 = vld [vmem:[%s275 + $0x1b4] sm:$0xff]
      %v412 = vld [vmem:[%s275 + $0x1bc] sm:$0xf]
      %v413 = vsub.bf16 1065369472, %v349
      %v414 = vsub.bf16 1065369472, %v350
      %v415 = vsub.bf16 1065369472, %v351
      %v416 = vsub.bf16 1065369472, %v352
      %v417 = vsub.bf16 1065369472, %v353
      %v418 = vsub.bf16 1065369472, %v354
      %v419 = vsub.bf16 1065369472, %v355
      %v420 = vsub.bf16 1065369472, %v356
      %v421 = vsub.bf16 1065369472, %v357
      %v422 = vsub.bf16 1065369472, %v358
      %v423 = vsub.bf16 1065369472, %v359
      %v424 = vsub.bf16 1065369472, %v360
      %v425 = vsub.bf16 1065369472, %v361
      %v426 = vsub.bf16 1065369472, %v362
      %v427 = vsub.bf16 1065369472, %v363
      %v428 = vsub.bf16 1065369472, %v364
      %v429 = vsub.bf16 1065369472, %v365
      %v430 = vsub.bf16 1065369472, %v366
      %v431 = vsub.bf16 1065369472, %v367
      %v432 = vsub.bf16 1065369472, %v368
      %v433 = vsub.bf16 1065369472, %v369
      %v434 = vsub.bf16 1065369472, %v370
      %v435 = vsub.bf16 1065369472, %v371
      %v436 = vsub.bf16 1065369472, %v372
      %v437 = vsub.bf16 1065369472, %v373
      %v438 = vsub.bf16 1065369472, %v374
      %v439 = vsub.bf16 1065369472, %v375
      %v440 = vsub.bf16 1065369472, %v376
      %v441 = vsub.bf16 1065369472, %v377
      %v442 = vsub.bf16 1065369472, %v378
      %v443 = vsub.bf16 1065369472, %v379
      %v444 = vsub.bf16 1065369472, %v380
      %v445 = vsub.bf16 1065369472, %v381
      %v446 = vsub.bf16 1065369472, %v382
      %v447 = vsub.bf16 1065369472, %v383
      %v448 = vsub.bf16 1065369472, %v384
      %v449 = vsub.bf16 1065369472, %v385
      %v450 = vsub.bf16 1065369472, %v386
      %v451 = vsub.bf16 1065369472, %v387
      %v452 = vsub.bf16 1065369472, %v388
      %v453 = vsub.bf16 1065369472, %v389
      %v454 = vsub.bf16 1065369472, %v390
      %v455 = vsub.bf16 1065369472, %v391
      %v456 = vsub.bf16 1065369472, %v392
      %v457 = vsub.bf16 1065369472, %v393
      %v458 = vsub.bf16 1065369472, %v394
      %v459 = vsub.bf16 1065369472, %v395
      %v460 = vsub.bf16 1065369472, %v396
      %v461 = vsub.bf16 1065369472, %v397
      %v462 = vsub.bf16 1065369472, %v398
      %v463 = vsub.bf16 1065369472, %v399
      %v464 = vsub.bf16 1065369472, %v400
      %v465 = vsub.bf16 1065369472, %v401
      %v466 = vsub.bf16 1065369472, %v402
      %v467 = vsub.bf16 1065369472, %v403
      %v468 = vsub.bf16 1065369472, %v404
      %v469 = vsub.bf16 1065369472, %v405
      %v470 = vsub.bf16 1065369472, %v406
      %v471 = vsub.bf16 1065369472, %v407
      %v472 = vsub.bf16 1065369472, %v408
      %v473 = vsub.bf16 1065369472, %v409
      %v474 = vsub.bf16 1065369472, %v410
      %v475 = vsub.bf16 1065369472, %v411
      %v476 = vsub.bf16 1065369472, %v412
      %v477 = vmul.bf16 %v285, %v413
      %v478 = vmul.bf16 %v286, %v414
      %v479 = vmul.bf16 %v287, %v415
      %v480 = vmul.bf16 %v288, %v416
      %v481 = vmul.bf16 %v289, %v417
      %v482 = vmul.bf16 %v290, %v418
      %v483 = vmul.bf16 %v291, %v419
      %v484 = vmul.bf16 %v292, %v420
      %v485 = vmul.bf16 %v293, %v421
      %v486 = vmul.bf16 %v294, %v422
      %v487 = vmul.bf16 %v295, %v423
      %v488 = vmul.bf16 %v296, %v424
      %v489 = vmul.bf16 %v297, %v425
      %v490 = vmul.bf16 %v298, %v426
      %v491 = vmul.bf16 %v299, %v427
      %v492 = vmul.bf16 %v300, %v428
      %v493 = vmul.bf16 %v301, %v429
      %v494 = vmul.bf16 %v302, %v430
      %v495 = vmul.bf16 %v303, %v431
      %v496 = vmul.bf16 %v304, %v432
      %v497 = vmul.bf16 %v305, %v433
      %v498 = vmul.bf16 %v306, %v434
      %v499 = vmul.bf16 %v307, %v435
      %v500 = vmul.bf16 %v308, %v436
      %v501 = vmul.bf16 %v309, %v437
      %v502 = vmul.bf16 %v310, %v438
      %v503 = vmul.bf16 %v311, %v439
      %v504 = vmul.bf16 %v312, %v440
      %v505 = vmul.bf16 %v313, %v441
      %v506 = vmul.bf16 %v314, %v442
      %v507 = vmul.bf16 %v315, %v443
      %v508 = vmul.bf16 %v316, %v444
      %v509 = vmul.bf16 %v317, %v445
      %v510 = vmul.bf16 %v318, %v446
      %v511 = vmul.bf16 %v319, %v447
      %v512 = vmul.bf16 %v320, %v448
      %v513 = vmul.bf16 %v321, %v449
      %v514 = vmul.bf16 %v322, %v450
      %v515 = vmul.bf16 %v323, %v451
      %v516 = vmul.bf16 %v324, %v452
      %v517 = vmul.bf16 %v325, %v453
      %v518 = vmul.bf16 %v326, %v454
      %v519 = vmul.bf16 %v327, %v455
      %v520 = vmul.bf16 %v328, %v456
      %v521 = vmul.bf16 %v329, %v457
      %v522 = vmul.bf16 %v330, %v458
      %v523 = vmul.bf16 %v331, %v459
      %v524 = vmul.bf16 %v332, %v460
      %v525 = vmul.bf16 %v333, %v461
      %v526 = vmul.bf16 %v334, %v462
      %v527 = vmul.bf16 %v335, %v463
      %v528 = vmul.bf16 %v336, %v464
      %v529 = vmul.bf16 %v337, %v465
      %v530 = vmul.bf16 %v338, %v466
      %v531 = vmul.bf16 %v339, %v467
      %v532 = vmul.bf16 %v340, %v468
      %v533 = vmul.bf16 %v341, %v469
      %v534 = vmul.bf16 %v342, %v470
      %v535 = vmul.bf16 %v343, %v471
      %v536 = vmul.bf16 %v344, %v472
      %v537 = vmul.bf16 %v345, %v473
      %v538 = vmul.bf16 %v346, %v474
      %v539 = vmul.bf16 %v347, %v475
      %v540 = vmul.bf16 %v348, %v476
      %v541 = vld [vmem:[%s2] sm:$0xf]
      %v542 = vld [vmem:[%s2 + $0x4] sm:$0xf]
      %v543 = vld [vmem:[%s2 + $0x8] sm:$0xf]
      %v544 = vld [vmem:[%s2 + $0xc] sm:$0xf]
      %v545 = vld [vmem:[%s2 + $0x10] sm:$0xf]
      %v546 = vld [vmem:[%s2 + $0x14] sm:$0xf]
      %v547 = vld [vmem:[%s2 + $0x18] sm:$0xf]
      %v548 = vld [vmem:[%s2 + $0x1c] sm:$0xf]
      %v549 = vld [vmem:[%s2 + $0x20] sm:$0xf]
      %v550 = vld [vmem:[%s2 + $0x24] sm:$0xf]
      %v551 = vld [vmem:[%s2 + $0x28] sm:$0xf]
      %v552 = vld [vmem:[%s2 + $0x2c] sm:$0xf]
      %v553 = vld [vmem:[%s2 + $0x30] sm:$0xf]
      %v554 = vld [vmem:[%s2 + $0x34] sm:$0xf]
      %v555 = vld [vmem:[%s2 + $0x38] sm:$0xf]
      %v556 = vld [vmem:[%s2 + $0x3c] sm:$0xf]
      %v557 = vld [vmem:[%s2 + $0x40] sm:$0xf]
      %v558 = vld [vmem:[%s2 + $0x44] sm:$0xf]
      %v559 = vld [vmem:[%s2 + $0x48] sm:$0xf]
      %v560 = vld [vmem:[%s2 + $0x4c] sm:$0xf]
      %v561 = vld [vmem:[%s2 + $0x50] sm:$0xf]
      %v562 = vld [vmem:[%s2 + $0x54] sm:$0xf]
      %v563 = vld [vmem:[%s2 + $0x58] sm:$0xf]
      %v564 = vld [vmem:[%s2 + $0x5c] sm:$0xf]
      %v565 = vld [vmem:[%s2 + $0x60] sm:$0xf]
      %v566 = vld [vmem:[%s2 + $0x64] sm:$0xf]
      %v567 = vld [vmem:[%s2 + $0x68] sm:$0xf]
      %v568 = vld [vmem:[%s2 + $0x6c] sm:$0xf]
      %v569 = vld [vmem:[%s2 + $0x70] sm:$0xf]
      %v570 = vld [vmem:[%s2 + $0x74] sm:$0xf]
      %v571 = vld [vmem:[%s2 + $0x78] sm:$0xf]
      %v572 = vld [vmem:[%s2 + $0x7c] sm:$0xf]
      %v573 = vld [vmem:[%s2 + $0x80] sm:$0xf]
      %v574 = vld [vmem:[%s2 + $0x84] sm:$0xf]
      %v575 = vld [vmem:[%s2 + $0x88] sm:$0xf]
      %v576 = vld [vmem:[%s2 + $0x8c] sm:$0xf]
      %v577 = vld [vmem:[%s2 + $0x90] sm:$0xf]
      %v578 = vld [vmem:[%s2 + $0x94] sm:$0xf]
      %v579 = vld [vmem:[%s2 + $0x98] sm:$0xf]
      %v580 = vld [vmem:[%s2 + $0x9c] sm:$0xf]
      %v581 = vld [vmem:[%s2 + $0xa0] sm:$0xf]
      %v582 = vld [vmem:[%s2 + $0xa4] sm:$0xf]
      %v583 = vld [vmem:[%s2 + $0xa8] sm:$0xf]
      %v584 = vld [vmem:[%s2 + $0xac] sm:$0xf]
      %v585 = vld [vmem:[%s2 + $0xb0] sm:$0xf]
      %v586 = vld [vmem:[%s2 + $0xb4] sm:$0xf]
      %v587 = vld [vmem:[%s2 + $0xb8] sm:$0xf]
      %v588 = vld [vmem:[%s2 + $0xbc] sm:$0xf]
      %v589 = vld [vmem:[%s2 + $0xc0] sm:$0xf]
      %v590 = vld [vmem:[%s2 + $0xc4] sm:$0xf]
      %v591 = vld [vmem:[%s2 + $0xc8] sm:$0xf]
      %v592 = vld [vmem:[%s2 + $0xcc] sm:$0xf]
      %v593 = vld [vmem:[%s2 + $0xd0] sm:$0xf]
      %v594 = vld [vmem:[%s2 + $0xd4] sm:$0xf]
      %v595 = vld [vmem:[%s2 + $0xd8] sm:$0xf]
      %v596 = vld [vmem:[%s2 + $0xdc] sm:$0xf]
      %v597 = vld [vmem:[%s2 + $0xe0] sm:$0xf]
      %v598 = vld [vmem:[%s2 + $0xe4] sm:$0xf]
      %v599 = vld [vmem:[%s2 + $0xe8] sm:$0xf]
      %v600 = vld [vmem:[%s2 + $0xec] sm:$0xf]
      %v601 = vld [vmem:[%s2 + $0xf0] sm:$0xf]
      %v602 = vld [vmem:[%s2 + $0xf4] sm:$0xf]
      %v603 = vld [vmem:[%s2 + $0xf8] sm:$0xf]
      %v604 = vld [vmem:[%s2 + $0xfc] sm:$0xf]
      %v605 = vld [vmem:[%s2 + $0x100] sm:$0xf]
      %v606 = vld [vmem:[%s2 + $0x104] sm:$0xf]
      %v607 = vld [vmem:[%s2 + $0x108] sm:$0xf]
      %v608 = vld [vmem:[%s2 + $0x10c] sm:$0xf]
      %v609 = vld [vmem:[%s2 + $0x110] sm:$0xf]
      %v610 = vld [vmem:[%s2 + $0x114] sm:$0xf]
      %v611 = vld [vmem:[%s2 + $0x118] sm:$0xf]
      %v612 = vld [vmem:[%s2 + $0x11c] sm:$0xf]
      %v613 = vld [vmem:[%s2 + $0x120] sm:$0xf]
      %v614 = vld [vmem:[%s2 + $0x124] sm:$0xf]
      %v615 = vld [vmem:[%s2 + $0x128] sm:$0xf]
      %v616 = vld [vmem:[%s2 + $0x12c] sm:$0xf]
      %v617 = vld [vmem:[%s2 + $0x130] sm:$0xf]
      %v618 = vld [vmem:[%s2 + $0x134] sm:$0xf]
      %v619 = vld [vmem:[%s2 + $0x138] sm:$0xf]
      %v620 = vld [vmem:[%s2 + $0x13c] sm:$0xf]
      %v621 = vld [vmem:[%s2 + $0x140] sm:$0xf]
      %v622 = vld [vmem:[%s2 + $0x144] sm:$0xf]
      %v623 = vld [vmem:[%s2 + $0x148] sm:$0xf]
      %v624 = vld [vmem:[%s2 + $0x14c] sm:$0xf]
      %v625 = vld [vmem:[%s2 + $0x150] sm:$0xf]
      %v626 = vld [vmem:[%s2 + $0x154] sm:$0xf]
      %v627 = vld [vmem:[%s2 + $0x158] sm:$0xf]
      %v628 = vld [vmem:[%s2 + $0x15c] sm:$0xf]
      %v629 = vld [vmem:[%s2 + $0x160] sm:$0xf]
      %v630 = vld [vmem:[%s2 + $0x164] sm:$0xf]
      %v631 = vld [vmem:[%s2 + $0x168] sm:$0xf]
      %v632 = vld [vmem:[%s2 + $0x16c] sm:$0xf]
      %v633 = vld [vmem:[%s2 + $0x170] sm:$0xf]
      %v634 = vld [vmem:[%s2 + $0x174] sm:$0xf]
      %v635 = vld [vmem:[%s2 + $0x178] sm:$0xf]
      %v636 = vld [vmem:[%s2 + $0x17c] sm:$0xf]
      %v637 = vld [vmem:[%s2 + $0x180] sm:$0xf]
      %v638 = vld [vmem:[%s2 + $0x184] sm:$0xf]
      %v639 = vld [vmem:[%s5] sm:$0x1]
      %v640 = vlaneseq
      %v641 = vshrl.u32 %v640, 7
      %v642 = vsub.s32 0, %v641
      %v643 = vrot.slane %v639, %v642
      %v708 = vunpack.c.l.b16 %v477
      %v709 = vunpack.c.h.b16 %v477
      %v710 = vunpack.c.l.b16 %v478
      %v711 = vunpack.c.h.b16 %v478
      %v712 = vunpack.c.l.b16 %v479
      %v713 = vunpack.c.h.b16 %v479
      %v714 = vunpack.c.l.b16 %v480
      %v715 = vunpack.c.l.b16 %v481
      %v716 = vunpack.c.h.b16 %v481
      %v717 = vunpack.c.l.b16 %v482
      %v718 = vunpack.c.h.b16 %v482
      %v719 = vunpack.c.l.b16 %v483
      %v720 = vunpack.c.h.b16 %v483
      %v721 = vunpack.c.l.b16 %v484
      %v722 = vunpack.c.l.b16 %v485
      %v723 = vunpack.c.h.b16 %v485
      %v724 = vunpack.c.l.b16 %v486
      %v725 = vunpack.c.h.b16 %v486
      %v726 = vunpack.c.l.b16 %v487
      %v727 = vunpack.c.h.b16 %v487
      %v728 = vunpack.c.l.b16 %v488
      %v729 = vunpack.c.l.b16 %v489
      %v730 = vunpack.c.h.b16 %v489
      %v731 = vunpack.c.l.b16 %v490
      %v732 = vunpack.c.h.b16 %v490
      %v733 = vunpack.c.l.b16 %v491
      %v734 = vunpack.c.h.b16 %v491
      %v735 = vunpack.c.l.b16 %v492
      %v736 = vunpack.c.l.b16 %v493
      %v737 = vunpack.c.h.b16 %v493
      %v738 = vunpack.c.l.b16 %v494
      %v739 = vunpack.c.h.b16 %v494
      %v740 = vunpack.c.l.b16 %v495
      %v741 = vunpack.c.h.b16 %v495
      %v742 = vunpack.c.l.b16 %v496
      %v743 = vunpack.c.l.b16 %v497
      %v744 = vunpack.c.h.b16 %v497
      %v745 = vunpack.c.l.b16 %v498
      %v746 = vunpack.c.h.b16 %v498
      %v747 = vunpack.c.l.b16 %v499
      %v748 = vunpack.c.h.b16 %v499
      %v749 = vunpack.c.l.b16 %v500
      %v750 = vunpack.c.l.b16 %v501
      %v751 = vunpack.c.h.b16 %v501
      %v752 = vunpack.c.l.b16 %v502
      %v753 = vunpack.c.h.b16 %v502
      %v754 = vunpack.c.l.b16 %v503
      %v755 = vunpack.c.h.b16 %v503
      %v756 = vunpack.c.l.b16 %v504
      %v757 = vunpack.c.l.b16 %v505
      %v758 = vunpack.c.h.b16 %v505
      %v759 = vunpack.c.l.b16 %v506
      %v760 = vunpack.c.h.b16 %v506
      %v761 = vunpack.c.l.b16 %v507
      %v762 = vunpack.c.h.b16 %v507
      %v763 = vunpack.c.l.b16 %v508
      %v764 = vunpack.c.l.b16 %v509
      %v765 = vunpack.c.h.b16 %v509
      %v766 = vunpack.c.l.b16 %v510
      %v767 = vunpack.c.h.b16 %v510
      %v768 = vunpack.c.l.b16 %v511
      %v769 = vunpack.c.h.b16 %v511
      %v770 = vunpack.c.l.b16 %v512
      %v771 = vunpack.c.l.b16 %v513
      %v772 = vunpack.c.h.b16 %v513
      %v773 = vunpack.c.l.b16 %v514
      %v774 = vunpack.c.h.b16 %v514
      %v775 = vunpack.c.l.b16 %v515
      %v776 = vunpack.c.h.b16 %v515
      %v777 = vunpack.c.l.b16 %v516
      %v778 = vunpack.c.l.b16 %v517
      %v779 = vunpack.c.h.b16 %v517
      %v780 = vunpack.c.l.b16 %v518
      %v781 = vunpack.c.h.b16 %v518
      %v782 = vunpack.c.l.b16 %v519
      %v783 = vunpack.c.h.b16 %v519
      %v784 = vunpack.c.l.b16 %v520
      %v785 = vunpack.c.l.b16 %v521
      %v786 = vunpack.c.h.b16 %v521
      %v787 = vunpack.c.l.b16 %v522
      %v788 = vunpack.c.h.b16 %v522
      %v789 = vunpack.c.l.b16 %v523
      %v790 = vunpack.c.h.b16 %v523
      %v791 = vunpack.c.l.b16 %v524
      %v792 = vunpack.c.l.b16 %v525
      %v793 = vunpack.c.h.b16 %v525
      %v794 = vunpack.c.l.b16 %v526
      %v795 = vunpack.c.h.b16 %v526
      %v796 = vunpack.c.l.b16 %v527
      %v797 = vunpack.c.h.b16 %v527
      %v798 = vunpack.c.l.b16 %v528
      %v799 = vunpack.c.l.b16 %v529
      %v800 = vunpack.c.h.b16 %v529
      %v801 = vunpack.c.l.b16 %v530
      %v802 = vunpack.c.h.b16 %v530
      %v803 = vunpack.c.l.b16 %v531
      %v804 = vunpack.c.h.b16 %v531
      %v805 = vunpack.c.l.b16 %v532
      %v806 = vunpack.c.l.b16 %v533
      %v807 = vunpack.c.h.b16 %v533
      %v808 = vunpack.c.l.b16 %v534
      %v809 = vunpack.c.h.b16 %v534
      %v810 = vunpack.c.l.b16 %v535
      %v811 = vunpack.c.h.b16 %v535
      %v812 = vunpack.c.l.b16 %v536
      %v813 = vunpack.c.l.b16 %v537
      %v814 = vunpack.c.h.b16 %v537
      %v815 = vunpack.c.l.b16 %v538
      %v816 = vunpack.c.h.b16 %v538
      %v817 = vunpack.c.l.b16 %v539
      %v818 = vunpack.c.h.b16 %v539
      %v819 = vunpack.c.l.b16 %v540
      %v820 = vpack.c.b16 %v715, %v708
      %v821 = vpack.c.b16 %v716, %v709
      %v822 = vpack.c.b16 %v717, %v710
      %v823 = vpack.c.b16 %v718, %v711
      %v824 = vpack.c.b16 %v719, %v712
      %v825 = vpack.c.b16 %v720, %v713
      %v826 = vpack.c.b16 %v721, %v714
      %v827 = vpack.c.b16 %v729, %v722
      %v828 = vpack.c.b16 %v730, %v723
      %v829 = vpack.c.b16 %v731, %v724
      %v830 = vpack.c.b16 %v732, %v725
      %v831 = vpack.c.b16 %v733, %v726
      %v832 = vpack.c.b16 %v734, %v727
      %v833 = vpack.c.b16 %v735, %v728
      %v834 = vpack.c.b16 %v743, %v736
      %v835 = vpack.c.b16 %v744, %v737
      %v836 = vpack.c.b16 %v745, %v738
      %v837 = vpack.c.b16 %v746, %v739
      %v838 = vpack.c.b16 %v747, %v740
      %v839 = vpack.c.b16 %v748, %v741
      %v840 = vpack.c.b16 %v749, %v742
      %v841 = vpack.c.b16 %v757, %v750
      %v842 = vpack.c.b16 %v758, %v751
      %v843 = vpack.c.b16 %v759, %v752
      %v844 = vpack.c.b16 %v760, %v753
      %v845 = vpack.c.b16 %v761, %v754
      %v846 = vpack.c.b16 %v762, %v755
      %v847 = vpack.c.b16 %v763, %v756
      %v848 = vpack.c.b16 %v771, %v764
      %v849 = vpack.c.b16 %v772, %v765
      %v850 = vpack.c.b16 %v773, %v766
      %v851 = vpack.c.b16 %v774, %v767
      %v852 = vpack.c.b16 %v775, %v768
      %v853 = vpack.c.b16 %v776, %v769
      %v854 = vpack.c.b16 %v777, %v770
      %v855 = vpack.c.b16 %v785, %v778
      %v856 = vpack.c.b16 %v786, %v779
      %v857 = vpack.c.b16 %v787, %v780
      %v858 = vpack.c.b16 %v788, %v781
      %v859 = vpack.c.b16 %v789, %v782
      %v860 = vpack.c.b16 %v790, %v783
      %v861 = vpack.c.b16 %v791, %v784
      %v862 = vpack.c.b16 %v799, %v792
      %v863 = vpack.c.b16 %v800, %v793
      %v864 = vpack.c.b16 %v801, %v794
      %v865 = vpack.c.b16 %v802, %v795
      %v866 = vpack.c.b16 %v803, %v796
      %v867 = vpack.c.b16 %v804, %v797
      %v868 = vpack.c.b16 %v805, %v798
      %v869 = vpack.c.b16 %v813, %v806
      %v870 = vpack.c.b16 %v814, %v807
      %v871 = vpack.c.b16 %v815, %v808
      %v872 = vpack.c.b16 %v816, %v809
      %v873 = vpack.c.b16 %v817, %v810
      %v874 = vpack.c.b16 %v818, %v811
      %v875 = vpack.c.b16 %v819, %v812
      %v1022 = vunpack.c.l.b16 %v541
      %v1023 = vunpack.c.l.b16 %v542
      %v1024 = vunpack.c.l.b16 %v543
      %v1025 = vunpack.c.l.b16 %v544
      %v1026 = vunpack.c.l.b16 %v545
      %v1027 = vunpack.c.l.b16 %v546
      %v1028 = vunpack.c.l.b16 %v547
      %v1029 = vunpack.c.l.b16 %v548
      %v1030 = vunpack.c.l.b16 %v549
      %v1031 = vunpack.c.l.b16 %v550
      %v1032 = vunpack.c.l.b16 %v551
      %v1033 = vunpack.c.l.b16 %v552
      %v1034 = vunpack.c.l.b16 %v553
      %v1035 = vunpack.c.l.b16 %v554
      %v1036 = vunpack.c.l.b16 %v555
      %v1037 = vunpack.c.l.b16 %v556
      %v1038 = vunpack.c.l.b16 %v557
      %v1039 = vunpack.c.l.b16 %v558
      %v1040 = vunpack.c.l.b16 %v559
      %v1041 = vunpack.c.l.b16 %v560
      %v1042 = vunpack.c.l.b16 %v561
      %v1043 = vunpack.c.l.b16 %v562
      %v1044 = vunpack.c.l.b16 %v563
      %v1045 = vunpack.c.l.b16 %v564
      %v1046 = vunpack.c.l.b16 %v565
      %v1047 = vunpack.c.l.b16 %v566
      %v1048 = vunpack.c.l.b16 %v567
      %v1049 = vunpack.c.l.b16 %v568
      %v1050 = vunpack.c.l.b16 %v569
      %v1051 = vunpack.c.l.b16 %v570
      %v1052 = vunpack.c.l.b16 %v571
      %v1053 = vunpack.c.l.b16 %v572
      %v1054 = vunpack.c.l.b16 %v573
      %v1055 = vunpack.c.l.b16 %v574
      %v1056 = vunpack.c.l.b16 %v575
      %v1057 = vunpack.c.l.b16 %v576
      %v1058 = vunpack.c.l.b16 %v577
      %v1059 = vunpack.c.l.b16 %v578
      %v1060 = vunpack.c.l.b16 %v579
      %v1061 = vunpack.c.l.b16 %v580
      %v1062 = vunpack.c.l.b16 %v581
      %v1063 = vunpack.c.l.b16 %v582
      %v1064 = vunpack.c.l.b16 %v583
      %v1065 = vunpack.c.l.b16 %v584
      %v1066 = vunpack.c.l.b16 %v585
      %v1067 = vunpack.c.l.b16 %v586
      %v1068 = vunpack.c.l.b16 %v587
      %v1069 = vunpack.c.l.b16 %v588
      %v1070 = vunpack.c.l.b16 %v589
      %v1071 = vunpack.c.l.b16 %v590
      %v1072 = vunpack.c.l.b16 %v591
      %v1073 = vunpack.c.l.b16 %v592
      %v1074 = vunpack.c.l.b16 %v593
      %v1075 = vunpack.c.l.b16 %v594
      %v1076 = vunpack.c.l.b16 %v595
      %v1077 = vunpack.c.l.b16 %v596
      %v1078 = vunpack.c.l.b16 %v597
      %v1079 = vunpack.c.l.b16 %v598
      %v1080 = vunpack.c.l.b16 %v599
      %v1081 = vunpack.c.l.b16 %v600
      %v1082 = vunpack.c.l.b16 %v601
      %v1083 = vunpack.c.l.b16 %v602
      %v1084 = vunpack.c.l.b16 %v603
      %v1085 = vunpack.c.l.b16 %v604
      %v1086 = vunpack.c.l.b16 %v605
      %v1087 = vunpack.c.l.b16 %v606
      %v1088 = vunpack.c.l.b16 %v607
      %v1089 = vunpack.c.l.b16 %v608
      %v1090 = vunpack.c.l.b16 %v609
      %v1091 = vunpack.c.l.b16 %v610
      %v1092 = vunpack.c.l.b16 %v611
      %v1093 = vunpack.c.l.b16 %v612
      %v1094 = vunpack.c.l.b16 %v613
      %v1095 = vunpack.c.l.b16 %v614
      %v1096 = vunpack.c.l.b16 %v615
      %v1097 = vunpack.c.l.b16 %v616
      %v1098 = vunpack.c.l.b16 %v617
      %v1099 = vunpack.c.l.b16 %v618
      %v1100 = vunpack.c.l.b16 %v619
      %v1101 = vunpack.c.l.b16 %v620
      %v1102 = vunpack.c.l.b16 %v621
      %v1103 = vunpack.c.l.b16 %v622
      %v1104 = vunpack.c.l.b16 %v623
      %v1105 = vunpack.c.l.b16 %v624
      %v1106 = vunpack.c.l.b16 %v625
      %v1107 = vunpack.c.l.b16 %v626
      %v1108 = vunpack.c.l.b16 %v627
      %v1109 = vunpack.c.l.b16 %v628
      %v1110 = vunpack.c.l.b16 %v629
      %v1111 = vunpack.c.l.b16 %v630
      %v1112 = vunpack.c.l.b16 %v631
      %v1113 = vunpack.c.l.b16 %v632
      %v1114 = vunpack.c.l.b16 %v633
      %v1115 = vunpack.c.l.b16 %v634
      %v1116 = vunpack.c.l.b16 %v635
      %v1117 = vunpack.c.l.b16 %v636
      %v1118 = vunpack.c.l.b16 %v637
      %v1119 = vunpack.c.l.b16 %v638
      %v1120 = vpack.c.b16 %v1023, %v1022
      %v1121 = vpack.c.b16 %v1025, %v1024
      %v1122 = vpack.c.b16 %v1027, %v1026
      %v1123 = vpack.c.b16 %v1029, %v1028
      %v1124 = vpack.c.b16 %v1031, %v1030
      %v1125 = vpack.c.b16 %v1033, %v1032
      %v1126 = vpack.c.b16 %v1035, %v1034
      %v1127 = vpack.c.b16 %v1037, %v1036
      %v1128 = vpack.c.b16 %v1039, %v1038
      %v1129 = vpack.c.b16 %v1041, %v1040
      %v1130 = vpack.c.b16 %v1043, %v1042
      %v1131 = vpack.c.b16 %v1045, %v1044
      %v1132 = vpack.c.b16 %v1047, %v1046
      %v1133 = vpack.c.b16 %v1049, %v1048
      %v1134 = vpack.c.b16 %v1051, %v1050
      %v1135 = vpack.c.b16 %v1053, %v1052
      %v1136 = vpack.c.b16 %v1055, %v1054
      %v1137 = vpack.c.b16 %v1057, %v1056
      %v1138 = vpack.c.b16 %v1059, %v1058
      %v1139 = vpack.c.b16 %v1061, %v1060
      %v1140 = vpack.c.b16 %v1063, %v1062
      %v1141 = vpack.c.b16 %v1065, %v1064
      %v1142 = vpack.c.b16 %v1067, %v1066
      %v1143 = vpack.c.b16 %v1069, %v1068
      %v1144 = vpack.c.b16 %v1071, %v1070
      %v1145 = vpack.c.b16 %v1073, %v1072
      %v1146 = vpack.c.b16 %v1075, %v1074
      %v1147 = vpack.c.b16 %v1077, %v1076
      %v1148 = vpack.c.b16 %v1079, %v1078
      %v1149 = vpack.c.b16 %v1081, %v1080
      %v1150 = vpack.c.b16 %v1083, %v1082
      %v1151 = vpack.c.b16 %v1085, %v1084
      %v1152 = vpack.c.b16 %v1087, %v1086
      %v1153 = vpack.c.b16 %v1089, %v1088
      %v1154 = vpack.c.b16 %v1091, %v1090
      %v1155 = vpack.c.b16 %v1093, %v1092
      %v1156 = vpack.c.b16 %v1095, %v1094
      %v1157 = vpack.c.b16 %v1097, %v1096
      %v1158 = vpack.c.b16 %v1099, %v1098
      %v1159 = vpack.c.b16 %v1101, %v1100
      %v1160 = vpack.c.b16 %v1103, %v1102
      %v1161 = vpack.c.b16 %v1105, %v1104
      %v1162 = vpack.c.b16 %v1107, %v1106
      %v1163 = vpack.c.b16 %v1109, %v1108
      %v1164 = vpack.c.b16 %v1111, %v1110
      %v1165 = vpack.c.b16 %v1113, %v1112
      %v1166 = vpack.c.b16 %v1115, %v1114
      %v1167 = vpack.c.b16 %v1117, %v1116
      %v1168 = vpack.c.b16 %v1119, %v1118
      %vm1218 = vcmask 130048
      %v1220 = vsel %vm1218, %v826, 0
      %v1223 = vsel %vm1218, %v833, 0
      %v1226 = vsel %vm1218, %v840, 0
      %v1229 = vsel %vm1218, %v847, 0
      %v1232 = vsel %vm1218, %v854, 0
      %v1235 = vsel %vm1218, %v861, 0
      %v1238 = vsel %vm1218, %v868, 0
      %v1241 = vsel %vm1218, %v875, 0
      %1243 = vmatprep.subr.bf16.mxu0 0
      %1244 = vmatpush1.bf16.msra.mxu0 %v1127
      %1245 = vmatprep.subr.bf16.mxu0 0
      %1246 = vmatpush1.bf16.msra.mxu0 %v1126
      %1247 = vmatprep.subr.bf16.mxu0 0
      %1248 = vmatpush1.bf16.msra.mxu0 %v1125
      %1249 = vmatprep.subr.bf16.mxu0 0
      %1250 = vmatpush1.bf16.msra.mxu0 %v1124
      %1251 = vmatprep.subr.bf16.mxu0 0
      %1252 = vmatpush1.bf16.msra.mxu0 %v1123
      %1253 = vmatprep.subr.bf16.mxu0 0
      %1254 = vmatpush1.bf16.msra.mxu0 %v1122
      %1255 = vmatprep.subr.bf16.mxu0 0
      %1256 = vmatpush1.bf16.msra.mxu0 %v1121
      %1257 = vmatprep.subr.bf16.mxu0 0
      %1258 = vmatpush1.bf16.msra.mxu0 %v1120
      %1259 = vmatprep.subr.bf16.mxu0 0
      %1260 = vmatpush2.bf16.msra.mxu0 %v1135
      %1261 = vmatprep.subr.bf16.mxu0 0
      %1262 = vmatpush2.bf16.msra.mxu0 %v1134
      %1263 = vmatprep.subr.bf16.mxu0 0
      %1264 = vmatpush2.bf16.msra.mxu0 %v1133
      %1265 = vmatprep.subr.bf16.mxu0 0
      %1266 = vmatpush2.bf16.msra.mxu0 %v1132
      %1267 = vmatprep.subr.bf16.mxu0 0
      %1268 = vmatpush2.bf16.msra.mxu0 %v1131
      %1269 = vmatprep.subr.bf16.mxu0 0
      %1270 = vmatpush2.bf16.msra.mxu0 %v1130
      %1271 = vmatprep.subr.bf16.mxu0 0
      %1272 = vmatpush2.bf16.msra.mxu0 %v1129
      %1273 = vmatprep.subr.bf16.mxu0 0
      %1274 = vmatpush2.bf16.msra.mxu0 %v1128
      %1275 = vmatprep.mubr.bf16.mxu0 %v821
      %1276 = vmatmul.mubr.bf16.gmra.mxu0 %v820
      %v1277 = vpop.f32.mrf.mxu0
      %v1278 = vadd.f32 %v643, %v1277
      %v1279 = vpop.f32.mrf.mxu0
      %v1280 = vpop.f32.mrf.mxu0
      %v1281 = vadd.f32 %v643, %v1280
      %v1282 = vpop.f32.mrf.mxu0
      %1283 = vmatprep.mubr.bf16.mxu0 %v828
      %1284 = vmatmul.mubr.bf16.gmra.mxu0 %v827
      %v1285 = vpop.f32.mrf.mxu0
      %v1286 = vadd.f32 %v643, %v1285
      %v1287 = vpop.f32.mrf.mxu0
      %v1288 = vpop.f32.mrf.mxu0
      %v1289 = vadd.f32 %v643, %v1288
      %v1290 = vpop.f32.mrf.mxu0
      %1291 = vmatprep.mubr.bf16.mxu0 %v835
      %1292 = vmatmul.mubr.bf16.gmra.mxu0 %v834
      %v1293 = vpop.f32.mrf.mxu0
      %v1294 = vadd.f32 %v643, %v1293
      %v1295 = vpop.f32.mrf.mxu0
      %v1296 = vpop.f32.mrf.mxu0
      %v1297 = vadd.f32 %v643, %v1296
      %v1298 = vpop.f32.mrf.mxu0
      %1299 = vmatprep.mubr.bf16.mxu0 %v842
      %1300 = vmatmul.mubr.bf16.gmra.mxu0 %v841
      %v1301 = vpop.f32.mrf.mxu0
      %v1302 = vadd.f32 %v643, %v1301
      %v1303 = vpop.f32.mrf.mxu0
      %v1304 = vpop.f32.mrf.mxu0
      %v1305 = vadd.f32 %v643, %v1304
      %v1306 = vpop.f32.mrf.mxu0
      %1307 = vmatprep.mubr.bf16.mxu0 %v849
      %1308 = vmatmul.mubr.bf16.gmra.mxu0 %v848
      %v1309 = vpop.f32.mrf.mxu0
      %v1310 = vadd.f32 %v643, %v1309
      %v1311 = vpop.f32.mrf.mxu0
      %v1312 = vpop.f32.mrf.mxu0
      %v1313 = vadd.f32 %v643, %v1312
      %v1314 = vpop.f32.mrf.mxu0
      %1315 = vmatprep.mubr.bf16.mxu0 %v856
      %1316 = vmatmul.mubr.bf16.gmra.mxu0 %v855
      %v1317 = vpop.f32.mrf.mxu0
      %v1318 = vadd.f32 %v643, %v1317
      %v1319 = vpop.f32.mrf.mxu0
      %v1320 = vpop.f32.mrf.mxu0
      %v1321 = vadd.f32 %v643, %v1320
      %v1322 = vpop.f32.mrf.mxu0
      %1323 = vmatprep.mubr.bf16.mxu0 %v863
      %1324 = vmatmul.mubr.bf16.gmra.mxu0 %v862
      %v1325 = vpop.f32.mrf.mxu0
      %v1326 = vadd.f32 %v643, %v1325
      %v1327 = vpop.f32.mrf.mxu0
      %v1328 = vpop.f32.mrf.mxu0
      %v1329 = vadd.f32 %v643, %v1328
      %v1330 = vpop.f32.mrf.mxu0
      %1331 = vmatprep.mubr.bf16.mxu0 %v870
      %1332 = vmatmul.mubr.bf16.gmra.mxu0 %v869
      %v1333 = vpop.f32.mrf.mxu0
      %v1334 = vadd.f32 %v643, %v1333
      %v1335 = vpop.f32.mrf.mxu0
      %v1336 = vpop.f32.mrf.mxu0
      %v1337 = vadd.f32 %v643, %v1336
      %v1338 = vpop.f32.mrf.mxu0
      %1339 = vdwg.mxu0
      %1340 = vmatprep.subr.bf16.mxu0 0
      %1341 = vmatpush1.bf16.msra.mxu0 %v1143
      %1342 = vmatprep.subr.bf16.mxu0 0
      %1343 = vmatpush1.bf16.msra.mxu0 %v1142
      %1344 = vmatprep.subr.bf16.mxu0 0
      %1345 = vmatpush1.bf16.msra.mxu0 %v1141
      %1346 = vmatprep.subr.bf16.mxu0 0
      %1347 = vmatpush1.bf16.msra.mxu0 %v1140
      %1348 = vmatprep.subr.bf16.mxu0 0
      %1349 = vmatpush1.bf16.msra.mxu0 %v1139
      %1350 = vmatprep.subr.bf16.mxu0 0
      %1351 = vmatpush1.bf16.msra.mxu0 %v1138
      %1352 = vmatprep.subr.bf16.mxu0 0
      %1353 = vmatpush1.bf16.msra.mxu0 %v1137
      %1354 = vmatprep.subr.bf16.mxu0 0
      %1355 = vmatpush1.bf16.msra.mxu0 %v1136
      %1356 = vmatprep.subr.bf16.mxu0 0
      %1357 = vmatpush2.bf16.msra.mxu0 %v1151
      %1358 = vmatprep.subr.bf16.mxu0 0
      %1359 = vmatpush2.bf16.msra.mxu0 %v1150
      %1360 = vmatprep.subr.bf16.mxu0 0
      %1361 = vmatpush2.bf16.msra.mxu0 %v1149
      %1362 = vmatprep.subr.bf16.mxu0 0
      %1363 = vmatpush2.bf16.msra.mxu0 %v1148
      %1364 = vmatprep.subr.bf16.mxu0 0
      %1365 = vmatpush2.bf16.msra.mxu0 %v1147
      %1366 = vmatprep.subr.bf16.mxu0 0
      %1367 = vmatpush2.bf16.msra.mxu0 %v1146
      %1368 = vmatprep.subr.bf16.mxu0 0
      %1369 = vmatpush2.bf16.msra.mxu0 %v1145
      %1370 = vmatprep.subr.bf16.mxu0 0
      %1371 = vmatpush2.bf16.msra.mxu0 %v1144
      %1372 = vmatprep.mubr.bf16.mxu0 %v823
      %1373 = vmatmul.mubr.bf16.gmra.mxu0 %v822
      %v1374 = vpop.f32.mrf.mxu0
      %v1375 = vadd.f32 %v1278, %v1374
      %v1376 = vpop.f32.mrf.mxu0
      %v1377 = vpop.f32.mrf.mxu0
      %v1378 = vadd.f32 %v1281, %v1377
      %v1379 = vpop.f32.mrf.mxu0
      %1380 = vmatprep.mubr.bf16.mxu0 %v830
      %1381 = vmatmul.mubr.bf16.gmra.mxu0 %v829
      %v1382 = vpop.f32.mrf.mxu0
      %v1383 = vadd.f32 %v1286, %v1382
      %v1384 = vpop.f32.mrf.mxu0
      %v1385 = vpop.f32.mrf.mxu0
      %v1386 = vadd.f32 %v1289, %v1385
      %v1387 = vpop.f32.mrf.mxu0
      %1388 = vmatprep.mubr.bf16.mxu0 %v837
      %1389 = vmatmul.mubr.bf16.gmra.mxu0 %v836
      %v1390 = vpop.f32.mrf.mxu0
      %v1391 = vadd.f32 %v1294, %v1390
      %v1392 = vpop.f32.mrf.mxu0
      %v1393 = vpop.f32.mrf.mxu0
      %v1394 = vadd.f32 %v1297, %v1393
      %v1395 = vpop.f32.mrf.mxu0
      %1396 = vmatprep.mubr.bf16.mxu0 %v844
      %1397 = vmatmul.mubr.bf16.gmra.mxu0 %v843
      %v1398 = vpop.f32.mrf.mxu0
      %v1399 = vadd.f32 %v1302, %v1398
      %v1400 = vpop.f32.mrf.mxu0
      %v1401 = vpop.f32.mrf.mxu0
      %v1402 = vadd.f32 %v1305, %v1401
      %v1403 = vpop.f32.mrf.mxu0
      %1404 = vmatprep.mubr.bf16.mxu0 %v851
      %1405 = vmatmul.mubr.bf16.gmra.mxu0 %v850
      %v1406 = vpop.f32.mrf.mxu0
      %v1407 = vadd.f32 %v1310, %v1406
      %v1408 = vpop.f32.mrf.mxu0
      %v1409 = vpop.f32.mrf.mxu0
      %v1410 = vadd.f32 %v1313, %v1409
      %v1411 = vpop.f32.mrf.mxu0
      %1412 = vmatprep.mubr.bf16.mxu0 %v858
      %1413 = vmatmul.mubr.bf16.gmra.mxu0 %v857
      %v1414 = vpop.f32.mrf.mxu0
      %v1415 = vadd.f32 %v1318, %v1414
      %v1416 = vpop.f32.mrf.mxu0
      %v1417 = vpop.f32.mrf.mxu0
      %v1418 = vadd.f32 %v1321, %v1417
      %v1419 = vpop.f32.mrf.mxu0
      %1420 = vmatprep.mubr.bf16.mxu0 %v865
      %1421 = vmatmul.mubr.bf16.gmra.mxu0 %v864
      %v1422 = vpop.f32.mrf.mxu0
      %v1423 = vadd.f32 %v1326, %v1422
      %v1424 = vpop.f32.mrf.mxu0
      %v1425 = vpop.f32.mrf.mxu0
      %v1426 = vadd.f32 %v1329, %v1425
      %v1427 = vpop.f32.mrf.mxu0
      %1428 = vmatprep.mubr.bf16.mxu0 %v872
      %1429 = vmatmul.mubr.bf16.gmra.mxu0 %v871
      %v1430 = vpop.f32.mrf.mxu0
      %v1431 = vadd.f32 %v1334, %v1430
      %v1432 = vpop.f32.mrf.mxu0
      %v1433 = vpop.f32.mrf.mxu0
      %v1434 = vadd.f32 %v1337, %v1433
      %v1435 = vpop.f32.mrf.mxu0
      %1436 = vdwg.mxu0
      %1437 = vmatprep.subr.bf16.mxu0 0
      %1438 = vmatpush1.bf16.msra.mxu0 %v1159
      %1439 = vmatprep.subr.bf16.mxu0 0
      %1440 = vmatpush1.bf16.msra.mxu0 %v1158
      %1441 = vmatprep.subr.bf16.mxu0 0
      %1442 = vmatpush1.bf16.msra.mxu0 %v1157
      %1443 = vmatprep.subr.bf16.mxu0 0
      %1444 = vmatpush1.bf16.msra.mxu0 %v1156
      %1445 = vmatprep.subr.bf16.mxu0 0
      %1446 = vmatpush1.bf16.msra.mxu0 %v1155
      %1447 = vmatprep.subr.bf16.mxu0 0
      %1448 = vmatpush1.bf16.msra.mxu0 %v1154
      %1449 = vmatprep.subr.bf16.mxu0 0
      %1450 = vmatpush1.bf16.msra.mxu0 %v1153
      %1451 = vmatprep.subr.bf16.mxu0 0
      %1452 = vmatpush1.bf16.msra.mxu0 %v1152
      %1453 = vmatprep.subr.bf16.mxu0 0
      %1454 = vmatpush2.bf16.msra.mxu0 %v1167
      %1455 = vmatprep.subr.bf16.mxu0 0
      %1456 = vmatpush2.bf16.msra.mxu0 %v1166
      %1457 = vmatprep.subr.bf16.mxu0 0
      %1458 = vmatpush2.bf16.msra.mxu0 %v1165
      %1459 = vmatprep.subr.bf16.mxu0 0
      %1460 = vmatpush2.bf16.msra.mxu0 %v1164
      %1461 = vmatprep.subr.bf16.mxu0 0
      %1462 = vmatpush2.bf16.msra.mxu0 %v1163
      %1463 = vmatprep.subr.bf16.mxu0 0
      %1464 = vmatpush2.bf16.msra.mxu0 %v1162
      %1465 = vmatprep.subr.bf16.mxu0 0
      %1466 = vmatpush2.bf16.msra.mxu0 %v1161
      %1467 = vmatprep.subr.bf16.mxu0 0
      %1468 = vmatpush2.bf16.msra.mxu0 %v1160
      %1469 = vmatprep.mubr.bf16.mxu0 %v825
      %1470 = vmatmul.mubr.bf16.gmra.mxu0 %v824
      %v1471 = vpop.f32.mrf.mxu0
      %v1472 = vadd.f32 %v1375, %v1471
      %v1473 = vpop.f32.mrf.mxu0
      %v1474 = vpop.f32.mrf.mxu0
      %v1475 = vadd.f32 %v1378, %v1474
      %v1476 = vpop.f32.mrf.mxu0
      %1477 = vmatprep.mubr.bf16.mxu0 %v832
      %1478 = vmatmul.mubr.bf16.gmra.mxu0 %v831
      %v1479 = vpop.f32.mrf.mxu0
      %v1480 = vadd.f32 %v1383, %v1479
      %v1481 = vpop.f32.mrf.mxu0
      %v1482 = vpop.f32.mrf.mxu0
      %v1483 = vadd.f32 %v1386, %v1482
      %v1484 = vpop.f32.mrf.mxu0
      %1485 = vmatprep.mubr.bf16.mxu0 %v839
      %1486 = vmatmul.mubr.bf16.gmra.mxu0 %v838
      %v1487 = vpop.f32.mrf.mxu0
      %v1488 = vadd.f32 %v1391, %v1487
      %v1489 = vpop.f32.mrf.mxu0
      %v1490 = vpop.f32.mrf.mxu0
      %v1491 = vadd.f32 %v1394, %v1490
      %v1492 = vpop.f32.mrf.mxu0
      %1493 = vmatprep.mubr.bf16.mxu0 %v846
      %1494 = vmatmul.mubr.bf16.gmra.mxu0 %v845
      %v1495 = vpop.f32.mrf.mxu0
      %v1496 = vadd.f32 %v1399, %v1495
      %v1497 = vpop.f32.mrf.mxu0
      %v1498 = vpop.f32.mrf.mxu0
      %v1499 = vadd.f32 %v1402, %v1498
      %v1500 = vpop.f32.mrf.mxu0
      %1501 = vmatprep.mubr.bf16.mxu0 %v853
      %1502 = vmatmul.mubr.bf16.gmra.mxu0 %v852
      %v1503 = vpop.f32.mrf.mxu0
      %v1504 = vadd.f32 %v1407, %v1503
      %v1505 = vpop.f32.mrf.mxu0
      %v1506 = vpop.f32.mrf.mxu0
      %v1507 = vadd.f32 %v1410, %v1506
      %v1508 = vpop.f32.mrf.mxu0
      %1509 = vmatprep.mubr.bf16.mxu0 %v860
      %1510 = vmatmul.mubr.bf16.gmra.mxu0 %v859
      %v1511 = vpop.f32.mrf.mxu0
      %v1512 = vadd.f32 %v1415, %v1511
      %v1513 = vpop.f32.mrf.mxu0
      %v1514 = vpop.f32.mrf.mxu0
      %v1515 = vadd.f32 %v1418, %v1514
      %v1516 = vpop.f32.mrf.mxu0
      %1517 = vmatprep.mubr.bf16.mxu0 %v867
      %1518 = vmatmul.mubr.bf16.gmra.mxu0 %v866
      %v1519 = vpop.f32.mrf.mxu0
      %v1520 = vadd.f32 %v1423, %v1519
      %v1521 = vpop.f32.mrf.mxu0
      %v1522 = vpop.f32.mrf.mxu0
      %v1523 = vadd.f32 %v1426, %v1522
      %v1524 = vpop.f32.mrf.mxu0
      %1525 = vmatprep.mubr.bf16.mxu0 %v874
      %1526 = vmatmul.mubr.bf16.gmra.mxu0 %v873
      %v1527 = vpop.f32.mrf.mxu0
      %v1528 = vadd.f32 %v1431, %v1527
      %v1529 = vpop.f32.mrf.mxu0
      %v1530 = vpop.f32.mrf.mxu0
      %v1531 = vadd.f32 %v1434, %v1530
      %v1532 = vpop.f32.mrf.mxu0
      %1533 = vdwg.mxu0
      %1534 = vmatprep.subr.bf16.mxu0 0
      %1535 = vmatpush1.bf16.msra.mxu0 0
      %1536 = vmatprep.subr.bf16.mxu0 0
      %1537 = vmatpush1.bf16.msra.mxu0 0
      %1538 = vmatprep.subr.bf16.mxu0 0
      %1539 = vmatpush1.bf16.msra.mxu0 0
      %1540 = vmatprep.subr.bf16.mxu0 0
      %1541 = vmatpush1.bf16.msra.mxu0 0
      %1542 = vmatprep.subr.bf16.mxu0 0
      %1543 = vmatpush1.bf16.msra.mxu0 0
      %1544 = vmatprep.subr.bf16.mxu0 0
      %1545 = vmatpush1.bf16.msra.mxu0 0
      %1546 = vmatprep.subr.bf16.mxu0 0
      %1547 = vmatpush1.bf16.msra.mxu0 0
      %1548 = vmatprep.subr.bf16.mxu0 0
      %1549 = vmatpush1.bf16.msra.mxu0 %v1168
      %1550 = vmatprep.subr.bf16.mxu0 0
      %1551 = vmatpush2.bf16.msra.mxu0 0
      %1552 = vmatprep.subr.bf16.mxu0 0
      %1553 = vmatpush2.bf16.msra.mxu0 0
      %1554 = vmatprep.subr.bf16.mxu0 0
      %1555 = vmatpush2.bf16.msra.mxu0 0
      %1556 = vmatprep.subr.bf16.mxu0 0
      %1557 = vmatpush2.bf16.msra.mxu0 0
      %1558 = vmatprep.subr.bf16.mxu0 0
      %1559 = vmatpush2.bf16.msra.mxu0 0
      %1560 = vmatprep.subr.bf16.mxu0 0
      %1561 = vmatpush2.bf16.msra.mxu0 0
      %1562 = vmatprep.subr.bf16.mxu0 0
      %1563 = vmatpush2.bf16.msra.mxu0 0
      %1564 = vmatprep.subr.bf16.mxu0 0
      %1565 = vmatpush2.bf16.msra.mxu0 0
      %1566 = vmatprep.mubr.bf16.mxu0 0
      %1567 = vmatmul.mubr.bf16.gmra.mxu0 %v1220
      %v1568 = vpop.f32.mrf.mxu0
      %v1569 = vadd.f32 %v1472, %v1568
      %v1570 = vpop.f32.mrf.mxu0
      %v1571 = vpop.f32.mrf.mxu0
      %v1572 = vadd.f32 %v1475, %v1571
      %v1573 = vpop.f32.mrf.mxu0
      %1574 = vmatprep.mubr.bf16.mxu0 0
      %1575 = vmatmul.mubr.bf16.gmra.mxu0 %v1223
      %v1576 = vpop.f32.mrf.mxu0
      %v1577 = vadd.f32 %v1480, %v1576
      %v1578 = vpop.f32.mrf.mxu0
      %v1579 = vpop.f32.mrf.mxu0
      %v1580 = vadd.f32 %v1483, %v1579
      %v1581 = vpop.f32.mrf.mxu0
      %1582 = vmatprep.mubr.bf16.mxu0 0
      %1583 = vmatmul.mubr.bf16.gmra.mxu0 %v1226
      %v1584 = vpop.f32.mrf.mxu0
      %v1585 = vadd.f32 %v1488, %v1584
      %v1586 = vpop.f32.mrf.mxu0
      %v1587 = vpop.f32.mrf.mxu0
      %v1588 = vadd.f32 %v1491, %v1587
      %v1589 = vpop.f32.mrf.mxu0
      %1590 = vmatprep.mubr.bf16.mxu0 0
      %1591 = vmatmul.mubr.bf16.gmra.mxu0 %v1229
      %v1592 = vpop.f32.mrf.mxu0
      %v1593 = vadd.f32 %v1496, %v1592
      %v1594 = vpop.f32.mrf.mxu0
      %v1595 = vpop.f32.mrf.mxu0
      %v1596 = vadd.f32 %v1499, %v1595
      %v1597 = vpop.f32.mrf.mxu0
      %1598 = vmatprep.mubr.bf16.mxu0 0
      %1599 = vmatmul.mubr.bf16.gmra.mxu0 %v1232
      %v1600 = vpop.f32.mrf.mxu0
      %v1601 = vadd.f32 %v1504, %v1600
      %v1602 = vpop.f32.mrf.mxu0
      %v1603 = vpop.f32.mrf.mxu0
      %v1604 = vadd.f32 %v1507, %v1603
      %v1605 = vpop.f32.mrf.mxu0
      %1606 = vmatprep.mubr.bf16.mxu0 0
      %1607 = vmatmul.mubr.bf16.gmra.mxu0 %v1235
      %v1608 = vpop.f32.mrf.mxu0
      %v1609 = vadd.f32 %v1512, %v1608
      %v1610 = vpop.f32.mrf.mxu0
      %v1611 = vpop.f32.mrf.mxu0
      %v1612 = vadd.f32 %v1515, %v1611
      %v1613 = vpop.f32.mrf.mxu0
      %1614 = vmatprep.mubr.bf16.mxu0 0
      %1615 = vmatmul.mubr.bf16.gmra.mxu0 %v1238
      %v1616 = vpop.f32.mrf.mxu0
      %v1617 = vadd.f32 %v1520, %v1616
      %v1618 = vpop.f32.mrf.mxu0
      %v1619 = vpop.f32.mrf.mxu0
      %v1620 = vadd.f32 %v1523, %v1619
      %v1621 = vpop.f32.mrf.mxu0
      %1622 = vmatprep.mubr.bf16.mxu0 0
      %1623 = vmatmul.mubr.bf16.gmra.mxu0 %v1241
      %v1624 = vpop.f32.mrf.mxu0
      %v1625 = vadd.f32 %v1528, %v1624
      %v1626 = vpop.f32.mrf.mxu0
      %v1627 = vpop.f32.mrf.mxu0
      %v1628 = vadd.f32 %v1531, %v1627
      %v1629 = vpop.f32.mrf.mxu0
      %1630 = vdwg.mxu0
      %v1631 = vmax.f32 %v1569, 0.0
      %v1632 = vmax.f32 %v1572, 0.0
      %v1633 = vmax.f32 %v1577, 0.0
      %v1634 = vmax.f32 %v1580, 0.0
      %v1635 = vmax.f32 %v1585, 0.0
      %v1636 = vmax.f32 %v1588, 0.0
      %v1637 = vmax.f32 %v1593, 0.0
      %v1638 = vmax.f32 %v1596, 0.0
      %v1639 = vmax.f32 %v1601, 0.0
      %v1640 = vmax.f32 %v1604, 0.0
      %v1641 = vmax.f32 %v1609, 0.0
      %v1642 = vmax.f32 %v1612, 0.0
      %v1643 = vmax.f32 %v1617, 0.0
      %v1644 = vmax.f32 %v1620, 0.0
      %v1645 = vmax.f32 %v1625, 0.0
      %v1646 = vmax.f32 %v1628, 0.0
      %v1647 = vpack.c.bf16 %v1632, %v1631
      %v1648 = vpack.c.bf16 %v1634, %v1633
      %v1649 = vpack.c.bf16 %v1636, %v1635
      %v1650 = vpack.c.bf16 %v1638, %v1637
      %v1651 = vpack.c.bf16 %v1640, %v1639
      %v1652 = vpack.c.bf16 %v1642, %v1641
      %v1653 = vpack.c.bf16 %v1644, %v1643
      %v1654 = vpack.c.bf16 %v1646, %v1645
      %v1655 = vld [vmem:[%s3] sm:$0xf]
      %v1656 = vld [vmem:[%s3 + $0x4] sm:$0xf]
      %v1657 = vld [vmem:[%s3 + $0x8] sm:$0xf]
      %v1658 = vld [vmem:[%s3 + $0xc] sm:$0xf]
      %v1659 = vld [vmem:[%s3 + $0x10] sm:$0xf]
      %v1660 = vld [vmem:[%s3 + $0x14] sm:$0xf]
      %v1661 = vld [vmem:[%s3 + $0x18] sm:$0xf]
      %v1662 = vld [vmem:[%s3 + $0x1c] sm:$0xf]
      %v1663 = vld [vmem:[%s3 + $0x20] sm:$0xf]
      %v1664 = vld [vmem:[%s3 + $0x24] sm:$0xf]
      %v1665 = vld [vmem:[%s3 + $0x28] sm:$0xf]
      %v1666 = vld [vmem:[%s3 + $0x2c] sm:$0xf]
      %v1667 = vld [vmem:[%s3 + $0x30] sm:$0xf]
      %v1668 = vld [vmem:[%s3 + $0x34] sm:$0xf]
      %v1669 = vld [vmem:[%s3 + $0x38] sm:$0xf]
      %v1670 = vld [vmem:[%s3 + $0x3c] sm:$0xf]
      %v1671 = vld [vmem:[%s5 + $0x1] sm:$0x1]
      %v1672 = vlaneseq
      %v1673 = vshrl.u32 %v1672, 7
      %v1674 = vsub.s32 0, %v1673
      %v1675 = vrot.slane %v1671, %v1674
      %v1692 = vunpack.c.l.b16 %v1655
      %v1693 = vunpack.c.l.b16 %v1656
      %v1694 = vunpack.c.l.b16 %v1657
      %v1695 = vunpack.c.l.b16 %v1658
      %v1696 = vunpack.c.l.b16 %v1659
      %v1697 = vunpack.c.l.b16 %v1660
      %v1698 = vunpack.c.l.b16 %v1661
      %v1699 = vunpack.c.l.b16 %v1662
      %v1700 = vunpack.c.l.b16 %v1663
      %v1701 = vunpack.c.l.b16 %v1664
      %v1702 = vunpack.c.l.b16 %v1665
      %v1703 = vunpack.c.l.b16 %v1666
      %v1704 = vunpack.c.l.b16 %v1667
      %v1705 = vunpack.c.l.b16 %v1668
      %v1706 = vunpack.c.l.b16 %v1669
      %v1707 = vunpack.c.l.b16 %v1670
      %v1708 = vpack.c.b16 %v1693, %v1692
      %v1709 = vpack.c.b16 %v1695, %v1694
      %v1710 = vpack.c.b16 %v1697, %v1696
      %v1711 = vpack.c.b16 %v1699, %v1698
      %v1712 = vpack.c.b16 %v1701, %v1700
      %v1713 = vpack.c.b16 %v1703, %v1702
      %v1714 = vpack.c.b16 %v1705, %v1704
      %v1715 = vpack.c.b16 %v1707, %v1706
      %1724 = vmatprep.subr.bf16.mxu0 0
      %1725 = vmatpush1.bf16.msra.mxu0 %v1715
      %1726 = vmatprep.subr.bf16.mxu0 0
      %1727 = vmatpush1.bf16.msra.mxu0 %v1714
      %1728 = vmatprep.subr.bf16.mxu0 0
      %1729 = vmatpush1.bf16.msra.mxu0 %v1713
      %1730 = vmatprep.subr.bf16.mxu0 0
      %1731 = vmatpush1.bf16.msra.mxu0 %v1712
      %1732 = vmatprep.subr.bf16.mxu0 0
      %1733 = vmatpush1.bf16.msra.mxu0 %v1711
      %1734 = vmatprep.subr.bf16.mxu0 0
      %1735 = vmatpush1.bf16.msra.mxu0 %v1710
      %1736 = vmatprep.subr.bf16.mxu0 0
      %1737 = vmatpush1.bf16.msra.mxu0 %v1709
      %1738 = vmatprep.subr.bf16.mxu0 0
      %1739 = vmatpush1.bf16.msra.mxu0 %v1708
      %1740 = vmatprep.subr.bf16.mxu0 0
      %1741 = vmatpush2.bf16.msra.mxu0 0
      %1742 = vmatprep.subr.bf16.mxu0 0
      %1743 = vmatpush2.bf16.msra.mxu0 0
      %1744 = vmatprep.subr.bf16.mxu0 0
      %1745 = vmatpush2.bf16.msra.mxu0 0
      %1746 = vmatprep.subr.bf16.mxu0 0
      %1747 = vmatpush2.bf16.msra.mxu0 0
      %1748 = vmatprep.subr.bf16.mxu0 0
      %1749 = vmatpush2.bf16.msra.mxu0 0
      %1750 = vmatprep.subr.bf16.mxu0 0
      %1751 = vmatpush2.bf16.msra.mxu0 0
      %1752 = vmatprep.subr.bf16.mxu0 0
      %1753 = vmatpush2.bf16.msra.mxu0 0
      %1754 = vmatprep.subr.bf16.mxu0 0
      %1755 = vmatpush2.bf16.msra.mxu0 0
      %1756 = vmatprep.mubr.bf16.mxu0 0
      %1757 = vmatmul.mubr.bf16.gmra.mxu0 %v1647
      %v1758 = vpop.f32.mrf.mxu0
      %v1759 = vadd.f32 %v1675, %v1758
      %v1760 = vpop.f32.mrf.mxu0
      %v1761 = vpop.f32.mrf.mxu0
      %v1762 = vadd.f32 %v1675, %v1761
      %v1763 = vpop.f32.mrf.mxu0
      %1764 = vmatprep.mubr.bf16.mxu0 0
      %1765 = vmatmul.mubr.bf16.gmra.mxu0 %v1648
      %v1766 = vpop.f32.mrf.mxu0
      %v1767 = vadd.f32 %v1675, %v1766
      %v1768 = vpop.f32.mrf.mxu0
      %v1769 = vpop.f32.mrf.mxu0
      %v1770 = vadd.f32 %v1675, %v1769
      %v1771 = vpop.f32.mrf.mxu0
      %1772 = vmatprep.mubr.bf16.mxu0 0
      %1773 = vmatmul.mubr.bf16.gmra.mxu0 %v1649
      %v1774 = vpop.f32.mrf.mxu0
      %v1775 = vadd.f32 %v1675, %v1774
      %v1776 = vpop.f32.mrf.mxu0
      %v1777 = vpop.f32.mrf.mxu0
      %v1778 = vadd.f32 %v1675, %v1777
      %v1779 = vpop.f32.mrf.mxu0
      %1780 = vmatprep.mubr.bf16.mxu0 0
      %1781 = vmatmul.mubr.bf16.gmra.mxu0 %v1650
      %v1782 = vpop.f32.mrf.mxu0
      %v1783 = vadd.f32 %v1675, %v1782
      %v1784 = vpop.f32.mrf.mxu0
      %v1785 = vpop.f32.mrf.mxu0
      %v1786 = vadd.f32 %v1675, %v1785
      %v1787 = vpop.f32.mrf.mxu0
      %1788 = vmatprep.mubr.bf16.mxu0 0
      %1789 = vmatmul.mubr.bf16.gmra.mxu0 %v1651
      %v1790 = vpop.f32.mrf.mxu0
      %v1791 = vadd.f32 %v1675, %v1790
      %v1792 = vpop.f32.mrf.mxu0
      %v1793 = vpop.f32.mrf.mxu0
      %v1794 = vadd.f32 %v1675, %v1793
      %v1795 = vpop.f32.mrf.mxu0
      %1796 = vmatprep.mubr.bf16.mxu0 0
      %1797 = vmatmul.mubr.bf16.gmra.mxu0 %v1652
      %v1798 = vpop.f32.mrf.mxu0
      %v1799 = vadd.f32 %v1675, %v1798
      %v1800 = vpop.f32.mrf.mxu0
      %v1801 = vpop.f32.mrf.mxu0
      %v1802 = vadd.f32 %v1675, %v1801
      %v1803 = vpop.f32.mrf.mxu0
      %1804 = vmatprep.mubr.bf16.mxu0 0
      %1805 = vmatmul.mubr.bf16.gmra.mxu0 %v1653
      %v1806 = vpop.f32.mrf.mxu0
      %v1807 = vadd.f32 %v1675, %v1806
      %v1808 = vpop.f32.mrf.mxu0
      %v1809 = vpop.f32.mrf.mxu0
      %v1810 = vadd.f32 %v1675, %v1809
      %v1811 = vpop.f32.mrf.mxu0
      %1812 = vmatprep.mubr.bf16.mxu0 0
      %1813 = vmatmul.mubr.bf16.gmra.mxu0 %v1654
      %v1814 = vpop.f32.mrf.mxu0
      %v1815 = vadd.f32 %v1675, %v1814
      %v1816 = vpop.f32.mrf.mxu0
      %v1817 = vpop.f32.mrf.mxu0
      %v1818 = vadd.f32 %v1675, %v1817
      %v1819 = vpop.f32.mrf.mxu0
      %1820 = vdwg.mxu0
      %v1821 = vmax.f32 %v1759, 0.0
      %v1822 = vmax.f32 %v1762, 0.0
      %v1823 = vmax.f32 %v1767, 0.0
      %v1824 = vmax.f32 %v1770, 0.0
      %v1825 = vmax.f32 %v1775, 0.0
      %v1826 = vmax.f32 %v1778, 0.0
      %v1827 = vmax.f32 %v1783, 0.0
      %v1828 = vmax.f32 %v1786, 0.0
      %v1829 = vmax.f32 %v1791, 0.0
      %v1830 = vmax.f32 %v1794, 0.0
      %v1831 = vmax.f32 %v1799, 0.0
      %v1832 = vmax.f32 %v1802, 0.0
      %v1833 = vmax.f32 %v1807, 0.0
      %v1834 = vmax.f32 %v1810, 0.0
      %v1835 = vmax.f32 %v1815, 0.0
      %v1836 = vmax.f32 %v1818, 0.0
      %v1837 = vpack.c.bf16 %v1822, %v1821
      %v1838 = vpack.c.bf16 %v1824, %v1823
      %v1839 = vpack.c.bf16 %v1826, %v1825
      %v1840 = vpack.c.bf16 %v1828, %v1827
      %v1841 = vpack.c.bf16 %v1830, %v1829
      %v1842 = vpack.c.bf16 %v1832, %v1831
      %v1843 = vpack.c.bf16 %v1834, %v1833
      %v1844 = vpack.c.bf16 %v1836, %v1835
      %v1845 = vld [vmem:[%s4] sm:$0xf]
      %v1846 = vld [vmem:[%s4 + $0x4] sm:$0xf]
      %v1847 = vld [vmem:[%s4 + $0x8] sm:$0xf]
      %v1848 = vld [vmem:[%s4 + $0xc] sm:$0xf]
      %v1849 = vld [vmem:[%s4 + $0x10] sm:$0xf]
      %v1850 = vld [vmem:[%s4 + $0x14] sm:$0xf]
      %v1851 = vld [vmem:[%s4 + $0x18] sm:$0xf]
      %v1852 = vld [vmem:[%s4 + $0x1c] sm:$0xf]
      %v1853 = vld [vmem:[%s4 + $0x20] sm:$0xf]
      %v1854 = vld [vmem:[%s4 + $0x24] sm:$0xf]
      %v1855 = vld [vmem:[%s4 + $0x28] sm:$0xf]
      %v1856 = vld [vmem:[%s4 + $0x2c] sm:$0xf]
      %v1857 = vld [vmem:[%s4 + $0x30] sm:$0xf]
      %v1858 = vld [vmem:[%s4 + $0x34] sm:$0xf]
      %v1859 = vld [vmem:[%s4 + $0x38] sm:$0xf]
      %v1860 = vld [vmem:[%s4 + $0x3c] sm:$0xf]
      %v1861 = vld [vmem:[%s5 + $0x2] sm:$0x1]
      %v1862 = vlaneseq
      %v1863 = vshrl.u32 %v1862, 7
      %v1864 = vsub.s32 0, %v1863
      %v1865 = vrot.slane %v1861, %v1864
      %v1882 = vunpack.c.l.b16 %v1845
      %v1883 = vunpack.c.l.b16 %v1846
      %v1884 = vunpack.c.l.b16 %v1847
      %v1885 = vunpack.c.l.b16 %v1848
      %v1886 = vunpack.c.l.b16 %v1849
      %v1887 = vunpack.c.l.b16 %v1850
      %v1888 = vunpack.c.l.b16 %v1851
      %v1889 = vunpack.c.l.b16 %v1852
      %v1890 = vunpack.c.l.b16 %v1853
      %v1891 = vunpack.c.l.b16 %v1854
      %v1892 = vunpack.c.l.b16 %v1855
      %v1893 = vunpack.c.l.b16 %v1856
      %v1894 = vunpack.c.l.b16 %v1857
      %v1895 = vunpack.c.l.b16 %v1858
      %v1896 = vunpack.c.l.b16 %v1859
      %v1897 = vunpack.c.l.b16 %v1860
      %v1898 = vpack.c.b16 %v1883, %v1882
      %v1899 = vpack.c.b16 %v1885, %v1884
      %v1900 = vpack.c.b16 %v1887, %v1886
      %v1901 = vpack.c.b16 %v1889, %v1888
      %v1902 = vpack.c.b16 %v1891, %v1890
      %v1903 = vpack.c.b16 %v1893, %v1892
      %v1904 = vpack.c.b16 %v1895, %v1894
      %v1905 = vpack.c.b16 %v1897, %v1896
      %1914 = vmatprep.subr.bf16.mxu0 0
      %1915 = vmatpush1.bf16.msra.mxu0 %v1905
      %1916 = vmatprep.subr.bf16.mxu0 0
      %1917 = vmatpush1.bf16.msra.mxu0 %v1904
      %1918 = vmatprep.subr.bf16.mxu0 0
      %1919 = vmatpush1.bf16.msra.mxu0 %v1903
      %1920 = vmatprep.subr.bf16.mxu0 0
      %1921 = vmatpush1.bf16.msra.mxu0 %v1902
      %1922 = vmatprep.subr.bf16.mxu0 0
      %1923 = vmatpush1.bf16.msra.mxu0 %v1901
      %1924 = vmatprep.subr.bf16.mxu0 0
      %1925 = vmatpush1.bf16.msra.mxu0 %v1900
      %1926 = vmatprep.subr.bf16.mxu0 0
      %1927 = vmatpush1.bf16.msra.mxu0 %v1899
      %1928 = vmatprep.subr.bf16.mxu0 0
      %1929 = vmatpush1.bf16.msra.mxu0 %v1898
      %1930 = vmatprep.subr.bf16.mxu0 0
      %1931 = vmatpush2.bf16.msra.mxu0 0
      %1932 = vmatprep.subr.bf16.mxu0 0
      %1933 = vmatpush2.bf16.msra.mxu0 0
      %1934 = vmatprep.subr.bf16.mxu0 0
      %1935 = vmatpush2.bf16.msra.mxu0 0
      %1936 = vmatprep.subr.bf16.mxu0 0
      %1937 = vmatpush2.bf16.msra.mxu0 0
      %1938 = vmatprep.subr.bf16.mxu0 0
      %1939 = vmatpush2.bf16.msra.mxu0 0
      %1940 = vmatprep.subr.bf16.mxu0 0
      %1941 = vmatpush2.bf16.msra.mxu0 0
      %1942 = vmatprep.subr.bf16.mxu0 0
      %1943 = vmatpush2.bf16.msra.mxu0 0
      %1944 = vmatprep.subr.bf16.mxu0 0
      %1945 = vmatpush2.bf16.msra.mxu0 0
      %1946 = vmatprep.mubr.bf16.mxu0 0
      %1947 = vmatmul.mubr.bf16.gmra.mxu0 %v1837
      %v1948 = vpop.f32.mrf.mxu0
      %v1949 = vadd.f32 %v1865, %v1948
      %v1950 = vpop.f32.mrf.mxu0
      %v1951 = vpop.f32.mrf.mxu0
      %v1952 = vadd.f32 %v1865, %v1951
      %v1953 = vpop.f32.mrf.mxu0
      %1954 = vmatprep.mubr.bf16.mxu0 0
      %1955 = vmatmul.mubr.bf16.gmra.mxu0 %v1838
      %v1956 = vpop.f32.mrf.mxu0
      %v1957 = vadd.f32 %v1865, %v1956
      %v1958 = vpop.f32.mrf.mxu0
      %v1959 = vpop.f32.mrf.mxu0
      %v1960 = vadd.f32 %v1865, %v1959
      %v1961 = vpop.f32.mrf.mxu0
      %1962 = vmatprep.mubr.bf16.mxu0 0
      %1963 = vmatmul.mubr.bf16.gmra.mxu0 %v1839
      %v1964 = vpop.f32.mrf.mxu0
      %v1965 = vadd.f32 %v1865, %v1964
      %v1966 = vpop.f32.mrf.mxu0
      %v1967 = vpop.f32.mrf.mxu0
      %v1968 = vadd.f32 %v1865, %v1967
      %v1969 = vpop.f32.mrf.mxu0
      %1970 = vmatprep.mubr.bf16.mxu0 0
      %1971 = vmatmul.mubr.bf16.gmra.mxu0 %v1840
      %v1972 = vpop.f32.mrf.mxu0
      %v1973 = vadd.f32 %v1865, %v1972
      %v1974 = vpop.f32.mrf.mxu0
      %v1975 = vpop.f32.mrf.mxu0
      %v1976 = vadd.f32 %v1865, %v1975
      %v1977 = vpop.f32.mrf.mxu0
      %1978 = vmatprep.mubr.bf16.mxu0 0
      %1979 = vmatmul.mubr.bf16.gmra.mxu0 %v1841
      %v1980 = vpop.f32.mrf.mxu0
      %v1981 = vadd.f32 %v1865, %v1980
      %v1982 = vpop.f32.mrf.mxu0
      %v1983 = vpop.f32.mrf.mxu0
      %v1984 = vadd.f32 %v1865, %v1983
      %v1985 = vpop.f32.mrf.mxu0
      %1986 = vmatprep.mubr.bf16.mxu0 0
      %1987 = vmatmul.mubr.bf16.gmra.mxu0 %v1842
      %v1988 = vpop.f32.mrf.mxu0
      %v1989 = vadd.f32 %v1865, %v1988
      %v1990 = vpop.f32.mrf.mxu0
      %v1991 = vpop.f32.mrf.mxu0
      %v1992 = vadd.f32 %v1865, %v1991
      %v1993 = vpop.f32.mrf.mxu0
      %1994 = vmatprep.mubr.bf16.mxu0 0
      %1995 = vmatmul.mubr.bf16.gmra.mxu0 %v1843
      %v1996 = vpop.f32.mrf.mxu0
      %v1997 = vadd.f32 %v1865, %v1996
      %v1998 = vpop.f32.mrf.mxu0
      %v1999 = vpop.f32.mrf.mxu0
      %v2000 = vadd.f32 %v1865, %v1999
      %v2001 = vpop.f32.mrf.mxu0
      %2002 = vmatprep.mubr.bf16.mxu0 0
      %2003 = vmatmul.mubr.bf16.gmra.mxu0 %v1844
      %v2004 = vpop.f32.mrf.mxu0
      %v2005 = vadd.f32 %v1865, %v2004
      %v2006 = vpop.f32.mrf.mxu0
      %v2007 = vpop.f32.mrf.mxu0
      %v2008 = vadd.f32 %v1865, %v2007
      %v2009 = vpop.f32.mrf.mxu0
      %2010 = vdwg.mxu0
      %v2011 = vpack.c.bf16 %v1952, %v1949
      %v2012 = vpack.c.bf16 %v1960, %v1957
      %v2013 = vpack.c.bf16 %v1968, %v1965
      %v2014 = vpack.c.bf16 %v1976, %v1973
      %v2015 = vpack.c.bf16 %v1984, %v1981
      %v2016 = vpack.c.bf16 %v1992, %v1989
      %v2017 = vpack.c.bf16 %v2000, %v1997
      %v2018 = vpack.c.bf16 %v2008, %v2005
      %v2027 = vunpack.c.l.b16 %v2011
      %v2028 = vunpack.c.h.b16 %v2011
      %v2029 = vunpack.c.l.b16 %v2012
      %v2030 = vunpack.c.h.b16 %v2012
      %v2031 = vunpack.c.l.b16 %v2013
      %v2032 = vunpack.c.h.b16 %v2013
      %v2033 = vunpack.c.l.b16 %v2014
      %v2034 = vunpack.c.h.b16 %v2014
      %v2035 = vunpack.c.l.b16 %v2015
      %v2036 = vunpack.c.h.b16 %v2015
      %v2037 = vunpack.c.l.b16 %v2016
      %v2038 = vunpack.c.h.b16 %v2016
      %v2039 = vunpack.c.l.b16 %v2017
      %v2040 = vunpack.c.h.b16 %v2017
      %v2041 = vunpack.c.l.b16 %v2018
      %v2042 = vunpack.c.h.b16 %v2018
      %v2043 = vpack.c.b16 %v2027, %v2027
      %v2044 = vpack.c.b16 %v2028, %v2028
      %v2045 = vpack.c.b16 %v2029, %v2029
      %v2046 = vpack.c.b16 %v2030, %v2030
      %v2047 = vpack.c.b16 %v2031, %v2031
      %v2048 = vpack.c.b16 %v2032, %v2032
      %v2049 = vpack.c.b16 %v2033, %v2033
      %v2050 = vpack.c.b16 %v2034, %v2034
      %v2051 = vpack.c.b16 %v2035, %v2035
      %v2052 = vpack.c.b16 %v2036, %v2036
      %v2053 = vpack.c.b16 %v2037, %v2037
      %v2054 = vpack.c.b16 %v2038, %v2038
      %v2055 = vpack.c.b16 %v2039, %v2039
      %v2056 = vpack.c.b16 %v2040, %v2040
      %v2057 = vpack.c.b16 %v2041, %v2041
      %v2058 = vpack.c.b16 %v2042, %v2042
      %2075 = vst [vmem:[%s281] sm:$0xf] %v2043
      %2076 = vst [vmem:[%s281 + $0x4] sm:$0xf] %v2044
      %2077 = vst [vmem:[%s281 + $0x8] sm:$0xf] %v2045
      %2078 = vst [vmem:[%s281 + $0xc] sm:$0xf] %v2046
      %2079 = vst [vmem:[%s281 + $0x10] sm:$0xf] %v2047
      %2080 = vst [vmem:[%s281 + $0x14] sm:$0xf] %v2048
      %2081 = vst [vmem:[%s281 + $0x18] sm:$0xf] %v2049
      %2082 = vst [vmem:[%s281 + $0x1c] sm:$0xf] %v2050
      %2083 = vst [vmem:[%s281 + $0x20] sm:$0xf] %v2051
      %2084 = vst [vmem:[%s281 + $0x24] sm:$0xf] %v2052
      %2085 = vst [vmem:[%s281 + $0x28] sm:$0xf] %v2053
      %2086 = vst [vmem:[%s281 + $0x2c] sm:$0xf] %v2054
      %2087 = vst [vmem:[%s281 + $0x30] sm:$0xf] %v2055
      %2088 = vst [vmem:[%s281 + $0x34] sm:$0xf] %v2056
      %2089 = vst [vmem:[%s281 + $0x38] sm:$0xf] %v2057
      %2090 = vst [vmem:[%s281 + $0x3c] sm:$0xf] %v2058
      %s2091 = smul.u32 16, %s17
      %p2092 = scmp.lt.s32.totalorder %s2091, 31
      %s2093 = scalar_select %p2092, %s2091, 31
      %s2094 = smul.addr %s2093, 4
      %s2095 = scalar_lea.vmem %s6, %s2094
      // Predicated region
      $region45: #{extended_model_forward.1} parent=43 // pred_check
        %p2096 = pneg %p171
      $region46: #{extended_model_forward.1} parent=43 // pred_check_branch
        %2098 = sbr.rel (%p2096) target = $region48
      $region47: #{extended_model_forward.1} parent=43 // pred_region
        %s2099 = smul.u32 16, %s17
      $region48: #{extended_model_forward.1} parent=43 // pred_fallthru
        _
    $region44: #{extended_model_forward.1} parent=5 // pred_fallthru
      _
    %p2100 = scmp.le.s32.totalorder 2, %s12
    // Predicated region
    $region49: #{extended_model_forward.1} parent=5 // pred_check
      %p2101 = pneg %p2100
    $region50: #{extended_model_forward.1} parent=5 // pred_check_branch
      %2103 = sbr.rel (%p2101) target = $region52
    $region51: #{extended_model_forward.1} parent=5 // pred_region
      %s2104 = ssub.s32 %s12, 2
      // Predicated region
      $region53: #{extended_model_forward.1} parent=51 // pred_check
        %p2105 = pneg %p177
      $region54: #{extended_model_forward.1} parent=51 // pred_check_branch
        %2107 = sbr.rel (%p2105) target = $region56
      $region55: #{extended_model_forward.1} parent=51 // pred_region
        %s2108 = smul.u32 16, %s18
        %p2109 = scmp.lt.s32.totalorder %s2108, 31
        %s2110 = scalar_select %p2109, %s2108, 31
        %s2111 = smul.addr %s2110, 4
        %s2112 = scalar_lea.vmem %s6, %s2111
      $region56: #{extended_model_forward.1} parent=51 // pred_fallthru
        _
    $region52: #{extended_model_forward.1} parent=5 // pred_fallthru
      _
  $region6: #{extended_model_forward.1} parent=0 // loop_footer
    %s16 = sadd.s32 1, %s12
  $region7: #{extended_model_forward.1} parent=0 // loop_footer_branch
    %11 = sbr.rel target = $region3
  $region8: #{extended_model_forward.1} parent=0 // loop_exit
    _

</llo_original>
